<compile_context>
chip_gen: v7x
topology: tpu7x:2x2x1
jax: 0.10.0
libtpu: 0.0.40
codegen_flags: <defaults>
</compile_context>

<pallas_src>
import functools

import jax
import jax.numpy as jnp
from jax.experimental import pallas as pl
from jax.experimental.pallas import tpu as pltpu


def _swd_kernel(x1_ref, x2_ref, w1t_ref, b1_ref, w2t_ref, b2_ref, gatt_ref,
                out_ref, *, len_reqd: int):
    # Column tile of lin1(x1): (B, TILE).
    y1 = (jnp.dot(x1_ref[...], w1t_ref[...], preferred_element_type=jnp.float32)
          + b1_ref[...])
    # Full lin2(x2): (B, T2).  B x T2 x T2 matmul with B == batch (tiny); cheaper
    # to recompute per column tile than to share state across parallel cores.
    y2 = (jnp.dot(x2_ref[...], w2t_ref[...], preferred_element_type=jnp.float32)
          + b2_ref[...])

    T2 = y2.shape[-1]
    # Sliding-window (banded) sum along the sequence/lane axis of y2:
    #   z2[b, r] = sum_{r': |r' - r| < len_reqd, 0 <= r' < T2} y2[b, r']
    # Implemented with lane rolls (XLU) + masked adds (VPU) instead of a
    # T2 x T2 band-mask matmul.  Rolling an iota alongside the values tells us
    # which source column landed at each lane, so the non-cyclic boundary
    # handling is exact and independent of the roll direction convention.
    lane = jax.lax.broadcasted_iota(jnp.int32, y2.shape, 1)
    z2 = y2
    for d in range(1, len_reqd):
        for s in (d, T2 - d):
            v = pltpu.roll(y2, shift=s, axis=1)
            src = pltpu.roll(lane, shift=s, axis=1)
            z2 = z2 + jnp.where(jnp.abs(src - lane) < len_reqd, v, 0.0)

    # localAtt tile = (band_mask @ tok.T) tile = z2.T @ y1  -> (T2, TILE).
    local = jax.lax.dot_general(
        z2, y1, (((0,), (0,)), ((), ())), preferred_element_type=jnp.float32)

    # LGatt = localAtt + globalAtt; softmax over axis 0 (rows).  Columns are
    # independent, so the per-tile softmax is exact.
    lg = local + gatt_ref[...]
    m = jnp.max(lg, axis=0, keepdims=True)
    e = jnp.exp(lg - m)
    denom = jnp.sum(e, axis=0, keepdims=True)
    out_ref[...] = e * pl.reciprocal(denom, approx=False)


def prepare_params(w1, b1, w2, b2):
    """One-time prep (hoisted out of the per-call path, per perf feedback):
    nn.Linear (out, in) weights -> (in, out) f32 so the kernel does y = x @ Wt + b;
    biases -> (1, T) rows."""
    return (jnp.asarray(w1, jnp.float32).T,
            jnp.asarray(b1, jnp.float32).reshape(1, -1),
            jnp.asarray(w2, jnp.float32).T,
            jnp.asarray(b2, jnp.float32).reshape(1, -1))


def swd_forward(x1, x2, w1t, b1_2d, w2t, b2_2d, global_att, *,
                w: int = 6, i: int = 2, col_tile=None):
    """Encoder-path SWD forward.  Returns the (T2, T1) softmax output."""
    B, T1 = x1.shape
    B2, T2 = x2.shape
    assert B == B2
    assert T1 == T2, "encoder: inputs are the same sequence"
    wind = w + i
    # TODO(synk): left-pad / column-shift path when T2 % windSize != 0 is not
    # implemented; we require exact window coverage (matches the default cfg).
    assert T2 % wind == 0
    assert T2 % 128 == 0, "lane-roll sliding window assumes a 128-aligned sequence"
    len_reqd = wind // 2

    if col_tile is None:
        col_tile = 128 if T1 % 128 == 0 else T1
    assert T1 % col_tile == 0
    n_col_tiles = T1 // col_tile

    kernel = functools.partial(_swd_kernel, len_reqd=len_reqd)

    return pl.pallas_call(
        kernel,
        out_shape=jax.ShapeDtypeStruct((T2, T1), jnp.float32),
        grid=(n_col_tiles,),
        in_specs=[
            pl.BlockSpec((B, T1), lambda c: (0, 0)),          # x1 (resident)
            pl.BlockSpec((B, T2), lambda c: (0, 0)),          # x2 (resident)
            pl.BlockSpec((T1, col_tile), lambda c: (0, c)),   # W1^T column strip
            pl.BlockSpec((1, col_tile), lambda c: (0, c)),    # b1  column strip
            pl.BlockSpec((T2, T2), lambda c: (0, 0)),         # W2^T (resident)
            pl.BlockSpec((1, T2), lambda c: (0, 0)),          # b2  (resident)
            pl.BlockSpec((T2, col_tile), lambda c: (0, c)),   # globalAtt strip
        ],
        out_specs=pl.BlockSpec((T2, col_tile), lambda c: (0, c)),
        compiler_params=pltpu.CompilerParams(
            dimension_semantics=("parallel",)),
    )(x1, x2, w1t, b1_2d, w2t, b2_2d, global_att)


def _reference(x1, x2, w1, b1, w2, b2, global_att, *, w=6, i=2):
    wind = w + i
    len_reqd = wind // 2
    T1 = x1.shape[1]
    T2 = x2.shape[1]
    y1 = x1 @ w1.T + b1
    y2 = x2 @ w2.T + b2
    tok = y1.T @ y2                                           # (T1, T2)
    r = jnp.arange(T2)[:, None]
    c = jnp.arange(T1)[None, :]
    mask = (jnp.abs(r - c) < len_reqd).astype(jnp.float32)    # (T2, T1)
    out = tok @ mask                                          # (T1, T1)
    lg = out.T + global_att
    return jax.nn.softmax(lg, axis=0)


if __name__ == "__main__":
    B, T1, T2, W, I = 8, 256, 256, 6, 2

    key = jax.random.PRNGKey(0)
    k_x1, k_x2, k_w1, k_b1, k_w2, k_b2, k_g = jax.random.split(key, 7)

    x1 = jax.random.normal(k_x1, (B, T1), dtype=jnp.float32)
    x2 = jax.random.normal(k_x2, (B, T2), dtype=jnp.float32)

    # nn.Linear-style deterministic init: U(-1/sqrt(in), 1/sqrt(in))
    bound1 = 1.0 / (T1 ** 0.5)
    bound2 = 1.0 / (T2 ** 0.5)
    w1 = jax.random.uniform(k_w1, (T1, T1), jnp.float32, -bound1, bound1)
    b1 = jax.random.uniform(k_b1, (T1,), jnp.float32, -bound1, bound1)
    w2 = jax.random.uniform(k_w2, (T2, T2), jnp.float32, -bound2, bound2)
    b2 = jax.random.uniform(k_b2, (T2,), jnp.float32, -bound2, bound2)

    # globalAtt = torch.randn((T2, T1)) — deterministic here.
    global_att = jax.random.normal(k_g, (T2, T1), dtype=jnp.float32)

    # One-time parameter prep (weight transpose / bias reshape) outside the call.
    w1t, b1_2d, w2t, b2_2d = prepare_params(w1, b1, w2, b2)

    out = swd_forward(x1, x2, w1t, b1_2d, w2t, b2_2d, global_att, w=W, i=I)
    out = jax.block_until_ready(out)

    ref = _reference(x1, x2, w1, b1, w2, b2, global_att, w=W, i=I)
    assert out.shape == (T2, T1)
    err = float(jnp.max(jnp.abs(out - ref)))
    assert jnp.allclose(out, ref, atol=2e-5, rtol=1e-4), f"max abs err {err}"

    print("KERNEL_OK")
</pallas_src>

<mosaic_0001>
module attributes {stable_mosaic.version = 11 : i64} {
  func.func @_swd_kernel(%arg0: i32, %arg1: memref<8x256xf32, #tpu.memory_space<vmem>>, %arg2: memref<8x256xf32, #tpu.memory_space<vmem>>, %arg3: memref<256x128xf32, #tpu.memory_space<vmem>>, %arg4: memref<1x128xf32, #tpu.memory_space<vmem>>, %arg5: memref<256x256xf32, #tpu.memory_space<vmem>>, %arg6: memref<1x256xf32, #tpu.memory_space<vmem>>, %arg7: memref<256x128xf32, #tpu.memory_space<vmem>>, %arg8: memref<256x128xf32, #tpu.memory_space<vmem>>) attributes {dimension_semantics = [#tpu.dimension_semantics<parallel>], iteration_bounds = array<i64: 2>, scalar_prefetch = 0 : i64, scratch_operands = 0 : i64, tpu.core_type = #tpu.core_type<tc>, window_params = [{pipeline_mode = #tpu.pipeline_mode<synchronous>, transform_indices = @transform_0, window_bounds = array<i64: 8, 256>}, {pipeline_mode = #tpu.pipeline_mode<synchronous>, transform_indices = @transform_1, window_bounds = array<i64: 8, 256>}, {transform_indices = @transform_2, window_bounds = array<i64: 256, 128>}, {transform_indices = @transform_3, window_bounds = array<i64: 1, 128>}, {pipeline_mode = #tpu.pipeline_mode<synchronous>, transform_indices = @transform_4, window_bounds = array<i64: 256, 256>}, {pipeline_mode = #tpu.pipeline_mode<synchronous>, transform_indices = @transform_5, window_bounds = array<i64: 1, 256>}, {transform_indices = @transform_6, window_bounds = array<i64: 256, 128>}, {transform_indices = @transform_7, window_bounds = array<i64: 256, 128>}]} {
    %c0 = arith.constant 0 : index
    %c0_0 = arith.constant 0 : index
    %0 = vector.load %arg1[%c0, %c0_0] : memref<8x256xf32, #tpu.memory_space<vmem>>, vector<8x256xf32>
    %c0_1 = arith.constant 0 : index
    %c0_2 = arith.constant 0 : index
    %1 = vector.load %arg3[%c0_1, %c0_2] : memref<256x128xf32, #tpu.memory_space<vmem>>, vector<256x128xf32>
    %cst = arith.constant dense<0.000000e+00> : vector<8x128xf32>
    %2 = tpu.matmul %0, %1, %cst {dimension_numbers = #tpu.dot_dimension_numbers<[1], [0], [0], [1], [0, 0, 1, 1], [], []>} : vector<8x256xf32>, vector<256x128xf32>, vector<8x128xf32> -> vector<8x128xf32>
    %c0_3 = arith.constant 0 : index
    %c0_4 = arith.constant 0 : index
    %3 = vector.load %arg4[%c0_3, %c0_4] : memref<1x128xf32, #tpu.memory_space<vmem>>, vector<1x128xf32>
    %4 = vector.broadcast %3 : vector<1x128xf32> to vector<8x128xf32>
    %5 = arith.addf %2, %4 : vector<8x128xf32>
    %c0_5 = arith.constant 0 : index
    %c0_6 = arith.constant 0 : index
    %6 = vector.load %arg2[%c0_5, %c0_6] : memref<8x256xf32, #tpu.memory_space<vmem>>, vector<8x256xf32>
    %c0_7 = arith.constant 0 : index
    %c0_8 = arith.constant 0 : index
    %7 = vector.load %arg5[%c0_7, %c0_8] : memref<256x256xf32, #tpu.memory_space<vmem>>, vector<256x256xf32>
    %cst_9 = arith.constant dense<0.000000e+00> : vector<8x256xf32>
    %8 = tpu.matmul %6, %7, %cst_9 {dimension_numbers = #tpu.dot_dimension_numbers<[1], [0], [0], [1], [0, 0, 1, 1], [], []>} : vector<8x256xf32>, vector<256x256xf32>, vector<8x256xf32> -> vector<8x256xf32>
    %c0_10 = arith.constant 0 : index
    %c0_11 = arith.constant 0 : index
    %9 = vector.load %arg6[%c0_10, %c0_11] : memref<1x256xf32, #tpu.memory_space<vmem>>, vector<1x256xf32>
    %10 = vector.broadcast %9 : vector<1x256xf32> to vector<8x256xf32>
    %11 = arith.addf %8, %10 : vector<8x256xf32>
    %12 = tpu.iota {dimensions = array<i32: 1>} : vector<8x256xi32>
    %c1_i32 = arith.constant 1 : i32
    %13 = tpu.dynamic_rotate %11 by %c1_i32 dim 1 : vector<8x256xf32>, i32 -> vector<8x256xf32>
    %c1_i32_12 = arith.constant 1 : i32
    %14 = tpu.dynamic_rotate %12 by %c1_i32_12 dim 1 : vector<8x256xi32>, i32 -> vector<8x256xi32>
    %15 = arith.subi %14, %12 : vector<8x256xi32>
    %16 = math.absi %15 : vector<8x256xi32>
    %c4_i32 = arith.constant 4 : i32
    %17 = vector.broadcast %c4_i32 : i32 to vector<8x256xi32>
    %18 = arith.cmpi slt, %16, %17 : vector<8x256xi32>
    %cst_13 = arith.constant 0.000000e+00 : f32
    %19 = vector.broadcast %cst_13 : f32 to vector<8x256xf32>
    %20 = arith.select %18, %13, %19 : vector<8x256xi1>, vector<8x256xf32>
    %21 = arith.addf %11, %20 : vector<8x256xf32>
    %c255_i32 = arith.constant 255 : i32
    %22 = tpu.dynamic_rotate %11 by %c255_i32 dim 1 : vector<8x256xf32>, i32 -> vector<8x256xf32>
    %c255_i32_14 = arith.constant 255 : i32
    %23 = tpu.dynamic_rotate %12 by %c255_i32_14 dim 1 : vector<8x256xi32>, i32 -> vector<8x256xi32>
    %24 = arith.subi %23, %12 : vector<8x256xi32>
    %25 = math.absi %24 : vector<8x256xi32>
    %c4_i32_15 = arith.constant 4 : i32
    %26 = vector.broadcast %c4_i32_15 : i32 to vector<8x256xi32>
    %27 = arith.cmpi slt, %25, %26 : vector<8x256xi32>
    %cst_16 = arith.constant 0.000000e+00 : f32
    %28 = vector.broadcast %cst_16 : f32 to vector<8x256xf32>
    %29 = arith.select %27, %22, %28 : vector<8x256xi1>, vector<8x256xf32>
    %30 = arith.addf %21, %29 : vector<8x256xf32>
    %c2_i32 = arith.constant 2 : i32
    %31 = tpu.dynamic_rotate %11 by %c2_i32 dim 1 : vector<8x256xf32>, i32 -> vector<8x256xf32>
    %c2_i32_17 = arith.constant 2 : i32
    %32 = tpu.dynamic_rotate %12 by %c2_i32_17 dim 1 : vector<8x256xi32>, i32 -> vector<8x256xi32>
    %33 = arith.subi %32, %12 : vector<8x256xi32>
    %34 = math.absi %33 : vector<8x256xi32>
    %c4_i32_18 = arith.constant 4 : i32
    %35 = vector.broadcast %c4_i32_18 : i32 to vector<8x256xi32>
    %36 = arith.cmpi slt, %34, %35 : vector<8x256xi32>
    %cst_19 = arith.constant 0.000000e+00 : f32
    %37 = vector.broadcast %cst_19 : f32 to vector<8x256xf32>
    %38 = arith.select %36, %31, %37 : vector<8x256xi1>, vector<8x256xf32>
    %39 = arith.addf %30, %38 : vector<8x256xf32>
    %c254_i32 = arith.constant 254 : i32
    %40 = tpu.dynamic_rotate %11 by %c254_i32 dim 1 : vector<8x256xf32>, i32 -> vector<8x256xf32>
    %c254_i32_20 = arith.constant 254 : i32
    %41 = tpu.dynamic_rotate %12 by %c254_i32_20 dim 1 : vector<8x256xi32>, i32 -> vector<8x256xi32>
    %42 = arith.subi %41, %12 : vector<8x256xi32>
    %43 = math.absi %42 : vector<8x256xi32>
    %c4_i32_21 = arith.constant 4 : i32
    %44 = vector.broadcast %c4_i32_21 : i32 to vector<8x256xi32>
    %45 = arith.cmpi slt, %43, %44 : vector<8x256xi32>
    %cst_22 = arith.constant 0.000000e+00 : f32
    %46 = vector.broadcast %cst_22 : f32 to vector<8x256xf32>
    %47 = arith.select %45, %40, %46 : vector<8x256xi1>, vector<8x256xf32>
    %48 = arith.addf %39, %47 : vector<8x256xf32>
    %c3_i32 = arith.constant 3 : i32
    %49 = tpu.dynamic_rotate %11 by %c3_i32 dim 1 : vector<8x256xf32>, i32 -> vector<8x256xf32>
    %c3_i32_23 = arith.constant 3 : i32
    %50 = tpu.dynamic_rotate %12 by %c3_i32_23 dim 1 : vector<8x256xi32>, i32 -> vector<8x256xi32>
    %51 = arith.subi %50, %12 : vector<8x256xi32>
    %52 = math.absi %51 : vector<8x256xi32>
    %c4_i32_24 = arith.constant 4 : i32
    %53 = vector.broadcast %c4_i32_24 : i32 to vector<8x256xi32>
    %54 = arith.cmpi slt, %52, %53 : vector<8x256xi32>
    %cst_25 = arith.constant 0.000000e+00 : f32
    %55 = vector.broadcast %cst_25 : f32 to vector<8x256xf32>
    %56 = arith.select %54, %49, %55 : vector<8x256xi1>, vector<8x256xf32>
    %57 = arith.addf %48, %56 : vector<8x256xf32>
    %c253_i32 = arith.constant 253 : i32
    %58 = tpu.dynamic_rotate %11 by %c253_i32 dim 1 : vector<8x256xf32>, i32 -> vector<8x256xf32>
    %c253_i32_26 = arith.constant 253 : i32
    %59 = tpu.dynamic_rotate %12 by %c253_i32_26 dim 1 : vector<8x256xi32>, i32 -> vector<8x256xi32>
    %60 = arith.subi %59, %12 : vector<8x256xi32>
    %61 = math.absi %60 : vector<8x256xi32>
    %c4_i32_27 = arith.constant 4 : i32
    %62 = vector.broadcast %c4_i32_27 : i32 to vector<8x256xi32>
    %63 = arith.cmpi slt, %61, %62 : vector<8x256xi32>
    %cst_28 = arith.constant 0.000000e+00 : f32
    %64 = vector.broadcast %cst_28 : f32 to vector<8x256xf32>
    %65 = arith.select %63, %58, %64 : vector<8x256xi1>, vector<8x256xf32>
    %66 = arith.addf %57, %65 : vector<8x256xf32>
    %cst_29 = arith.constant dense<0.000000e+00> : vector<256x128xf32>
    %67 = tpu.matmul %66, %5, %cst_29 {dimension_numbers = #tpu.dot_dimension_numbers<[0], [0], [1], [1], [0, 1, 1, 1], [], []>} : vector<8x256xf32>, vector<8x128xf32>, vector<256x128xf32> -> vector<256x128xf32>
    %c0_30 = arith.constant 0 : index
    %c0_31 = arith.constant 0 : index
    %68 = vector.load %arg7[%c0_30, %c0_31] : memref<256x128xf32, #tpu.memory_space<vmem>>, vector<256x128xf32>
    %69 = arith.addf %67, %68 : vector<256x128xf32>
    %cst_32 = arith.constant dense<0xFF800000> : vector<128xf32>
    %70 = vector.multi_reduction <maximumf>, %69, %cst_32 [0] : vector<256x128xf32> to vector<128xf32>
    %71 = vector.shape_cast %70 : vector<128xf32> to vector<1x128xf32>
    %72 = vector.broadcast %71 : vector<1x128xf32> to vector<256x128xf32>
    %73 = arith.subf %69, %72 : vector<256x128xf32>
    %74 = math.exp %73 : vector<256x128xf32>
    %cst_33 = arith.constant dense<0.000000e+00> : vector<128xf32>
    %75 = vector.multi_reduction <add>, %74, %cst_33 [0] : vector<256x128xf32> to vector<128xf32>
    %76 = vector.shape_cast %75 : vector<128xf32> to vector<1x128xf32>
    %77 = tpu.reciprocal %76 : vector<1x128xf32> -> vector<1x128xf32>
    %78 = vector.broadcast %77 : vector<1x128xf32> to vector<256x128xf32>
    %79 = arith.mulf %74, %78 : vector<256x128xf32>
    %c0_34 = arith.constant 0 : index
    %c0_35 = arith.constant 0 : index
    %80 = vector.load %arg8[%c0_34, %c0_35] : memref<256x128xf32, #tpu.memory_space<vmem>>, vector<256x128xf32>
    tpu.vector_store %arg8[%c0_34, %c0_35], %79 {strides = array<i32>} : memref<256x128xf32, #tpu.memory_space<vmem>>, vector<256x128xf32>,
    return
  }
  func.func @transform_0(%arg0: i32) -> (i32, i32) {
    %c0_i32 = arith.constant 0 : i32
    %c0_i32_0 = arith.constant 0 : i32
    %c0_i32_1 = arith.constant 0 : i32
    return %c0_i32, %c0_i32_0 : i32, i32
  }
  func.func @transform_1(%arg0: i32) -> (i32, i32) {
    %c0_i32 = arith.constant 0 : i32
    %c0_i32_0 = arith.constant 0 : i32
    %c0_i32_1 = arith.constant 0 : i32
    return %c0_i32, %c0_i32_0 : i32, i32
  }
  func.func @transform_2(%arg0: i32) -> (i32, i32) {
    %c0_i32 = arith.constant 0 : i32
    %c0_i32_0 = arith.constant 0 : i32
    return %c0_i32, %arg0 : i32, i32
  }
  func.func @transform_3(%arg0: i32) -> (i32, i32) {
    %c0_i32 = arith.constant 0 : i32
    %c0_i32_0 = arith.constant 0 : i32
    return %c0_i32, %arg0 : i32, i32
  }
  func.func @transform_4(%arg0: i32) -> (i32, i32) {
    %c0_i32 = arith.constant 0 : i32
    %c0_i32_0 = arith.constant 0 : i32
    %c0_i32_1 = arith.constant 0 : i32
    return %c0_i32, %c0_i32_0 : i32, i32
  }
  func.func @transform_5(%arg0: i32) -> (i32, i32) {
    %c0_i32 = arith.constant 0 : i32
    %c0_i32_0 = arith.constant 0 : i32
    %c0_i32_1 = arith.constant 0 : i32
    return %c0_i32, %c0_i32_0 : i32, i32
  }
  func.func @transform_6(%arg0: i32) -> (i32, i32) {
    %c0_i32 = arith.constant 0 : i32
    %c0_i32_0 = arith.constant 0 : i32
    return %c0_i32, %arg0 : i32, i32
  }
  func.func @transform_7(%arg0: i32) -> (i32, i32) {
    %c0_i32 = arith.constant 0 : i32
    %c0_i32_0 = arith.constant 0 : i32
    return %c0_i32, %arg0 : i32, i32
  }
}

</mosaic_0001>

<llo_original>
// kernel: tpu_custom_call.1
$region0: #{tpu_custom_call.1}
  #allocation0 [shape = 'u32[]', space=smem, size = 0x4, offset = 0x4, fixed_abs, tag = 'smem constant byte address 0x4 - core index']
  #allocation1 [shape = 'u32[144,128]{1,0:T(1,128)}', space=vmem, size = 0x12000, scoped, tag = 'internal scratch']
  %s0 = inlined_call_operand.hbm [shape: f32[8,256], index: 0, kind: input, shape index: {}]
  %s1 = inlined_call_operand.hbm [shape: f32[8,256], index: 1, kind: input, shape index: {}]
  %s2 = inlined_call_operand.hbm [shape: f32[256,256], index: 2, kind: input, shape index: {}]
  %s3 = inlined_call_operand.vmem [shape: f32[1,256], index: 3, kind: input, shape index: {}]
  %s4 = inlined_call_operand.hbm [shape: f32[256,256], index: 4, kind: input, shape index: {}]
  %s5 = inlined_call_operand.vmem [shape: f32[1,256], index: 5, kind: input, shape index: {}]
  %s6 = inlined_call_operand.hbm [shape: f32[256,256], index: 6, kind: input, shape index: {}]
  %s7 = inlined_call_operand.hbm [shape: f32[256,256], index: 7, kind: output, shape index: {}]
  %s8 = sld [smem:[#allocation0]]
  $region81: #{tpu_custom_call.1} parent=0
    _
  %s10 = ssub.s32 1, %s8
  %s11 = scalar_select 0, %s10, %s8
  $region1: #{tpu_custom_call.1} parent=0
    #allocation2 [shape = 'u8[8192]{0}', space=vmem, size = 0x2000, scoped, tag = 'input window, operand 0, single buffered']
    #allocation3 [shape = 's32[2]{0}', space=sflag, size = 0x8, scoped, tag = 'scoped memory for tpu_custom_call.1']
    #allocation4 [shape = 's32[2]{0}', space=sflag, size = 0x8, scoped, tag = 'scoped memory for tpu_custom_call.1']
    #allocation5 [shape = 'u8[8192]{0}', space=vmem, size = 0x2000, scoped, tag = 'input window, operand 1, single buffered']
    #allocation6 [shape = 's32[1]{0}', space=sflag, size = 0x4, scoped, tag = 'scoped memory for tpu_custom_call.1']
    #allocation7 [shape = 'u8[262144]{0}', space=vmem, size = 0x40000, scoped, tag = 'input window, operand 2']
    #allocation8 [shape = 'u8[262144]{0}', space=vmem, size = 0x40000, scoped, tag = 'input window, operand 4, single buffered']
    #allocation9 [shape = 'u8[262144]{0}', space=vmem, size = 0x40000, scoped, tag = 'input window, operand 6']
    #allocation10 [shape = 's32[2]{0}', space=sflag, size = 0x8, scoped, tag = 'scoped memory for tpu_custom_call.1']
    #allocation11 [shape = 'u8[262144]{0}', space=vmem, size = 0x40000, scoped, tag = 'output window, operand 0']
    %12 = vsyncpa [#allocation3], 0
    %13 = vsyncpa [#allocation6], 0
    %14 = vsyncpa [#allocation10], 0
    %s15 = scalar_lea.sflag [#allocation10], 1
    %16 = vsyncpa %s15, 0
    %17 = vsyncpa [#allocation4], 0
    %s18 = scalar_lea.sflag [#allocation4], 1
    %19 = vsyncpa %s18, 0
    loop: start=0, step=1, limit=4
    $region2: #{tpu_custom_call.1} parent=1 // loop_pre_header
      _
    $region3: #{tpu_custom_call.1} parent=1 // loop_header
      %s21 = sphi 0, %s25
      %p22 = scmp.ge.s32.totalorder %s21, 4
      %s29 = sphi 0, %s29
      %s31 = sphi 0, %s29
      %s32 = sphi 0, %s31
      %s46 = sphi 0, %s32
      %s50 = sphi 0, %s50
      %s52 = sphi 0, %s50
      %s53 = sphi 0, %s52
      %s67 = sphi 0, %s53
      %s73 = sphi 0, %s75
      %s76 = sphi 0, %s73
      %s77 = sphi 0, %s76
      %s93 = sphi 0, %s77
      %s99 = sphi 0, %s101
      %s102 = sphi 0, %s99
      %s103 = sphi 0, %s102
      %s119 = sphi 0, %s103
      %s123 = sphi 0, %s123
      %s125 = sphi 0, %s123
      %s126 = sphi 0, %s125
      %s140 = sphi 0, %s126
      %s144 = sphi 0, %s144
      %s146 = sphi 0, %s144
      %s147 = sphi 0, %s146
      %s161 = sphi 0, %s147
      %s167 = sphi 0, %s169
      %s170 = sphi 0, %s167
      %s171 = sphi 0, %s170
      %s187 = sphi 0, %s171
      %s193 = sphi 0, %s195
      %s196 = sphi 0, %s193
      %s197 = sphi 0, %s196
      %s213 = sphi 0, %s197
    $region4: #{tpu_custom_call.1} parent=1 // loop_header_branch
      %24 = sbr.rel (%p22) target = $region8
    $region5: #{tpu_custom_call.1} parent=1 // loop_body
      %s26 = ssub.s32 %s21, 1
      %s27 = ssub.s32 %s21, 2
      %s28 = sadd.s32 %s21, 1
      %s30 = sadd.s32 %s29, 1
      %p33 = scmp.eq.s32.totalorder %s21, 1
      %p34 = scmp.ne.s32.totalorder %s29, %s31
      %p35 = scmp.eq.s32.totalorder %s21, 0
      %p36 = por %p34, %p35
      %p37 = scmp.ne.s32.totalorder %s29, %s31
      %p38 = scmp.eq.s32.totalorder %s26, 1
      %p39 = por %p37, %p38
      %p40 = scmp.ne.s32.totalorder %s31, %s32
      %p41 = scmp.eq.s32.totalorder %s26, 0
      %p42 = por %p40, %p41
      %p43 = scmp.ne.s32.totalorder %s31, %s32
      %p44 = scmp.eq.s32.totalorder %s27, 1
      %p45 = por %p43, %p44
      %p47 = scmp.ne.s32.totalorder %s32, %s46
      %p48 = scmp.eq.s32.totalorder %s27, 0
      %p49 = por %p47, %p48
      %s51 = sadd.s32 %s50, 1
      %p54 = scmp.eq.s32.totalorder %s21, 1
      %p55 = scmp.ne.s32.totalorder %s50, %s52
      %p56 = scmp.eq.s32.totalorder %s21, 0
      %p57 = por %p55, %p56
      %p58 = scmp.ne.s32.totalorder %s50, %s52
      %p59 = scmp.eq.s32.totalorder %s26, 1
      %p60 = por %p58, %p59
      %p61 = scmp.ne.s32.totalorder %s52, %s53
      %p62 = scmp.eq.s32.totalorder %s26, 0
      %p63 = por %p61, %p62
      %p64 = scmp.ne.s32.totalorder %s52, %s53
      %p65 = scmp.eq.s32.totalorder %s27, 1
      %p66 = por %p64, %p65
      %p68 = scmp.ne.s32.totalorder %s53, %s67
      %p69 = scmp.eq.s32.totalorder %s27, 0
      %p70 = por %p68, %p69
      %s71 = ssub.s32 %s21, %s28
      %p72 = scmp.eq.s32.totalorder %s71, 0
      %s74 = sadd.s32 %s73, 1
      %s75 = scalar_select %p72, %s73, %s74
      %p78 = pneg %p72
      %p79 = scmp.eq.s32.totalorder %s21, 1
      %p80 = por %p78, %p79
      %p81 = scmp.ne.s32.totalorder %s73, %s76
      %p82 = scmp.eq.s32.totalorder %s21, 0
      %p83 = por %p81, %p82
      %p84 = scmp.ne.s32.totalorder %s73, %s76
      %p85 = scmp.eq.s32.totalorder %s26, 1
      %p86 = por %p84, %p85
      %p87 = scmp.ne.s32.totalorder %s76, %s77
      %p88 = scmp.eq.s32.totalorder %s26, 0
      %p89 = por %p87, %p88
      %p90 = scmp.ne.s32.totalorder %s76, %s77
      %p91 = scmp.eq.s32.totalorder %s27, 1
      %p92 = por %p90, %p91
      %p94 = scmp.ne.s32.totalorder %s77, %s93
      %p95 = scmp.eq.s32.totalorder %s27, 0
      %p96 = por %p94, %p95
      %s97 = ssub.s32 %s21, %s28
      %p98 = scmp.eq.s32.totalorder %s97, 0
      %s100 = sadd.s32 %s99, 1
      %s101 = scalar_select %p98, %s99, %s100
      %p104 = pneg %p98
      %p105 = scmp.eq.s32.totalorder %s21, 1
      %p106 = por %p104, %p105
      %p107 = scmp.ne.s32.totalorder %s99, %s102
      %p108 = scmp.eq.s32.totalorder %s21, 0
      %p109 = por %p107, %p108
      %p110 = scmp.ne.s32.totalorder %s99, %s102
      %p111 = scmp.eq.s32.totalorder %s26, 1
      %p112 = por %p110, %p111
      %p113 = scmp.ne.s32.totalorder %s102, %s103
      %p114 = scmp.eq.s32.totalorder %s26, 0
      %p115 = por %p113, %p114
      %p116 = scmp.ne.s32.totalorder %s102, %s103
      %p117 = scmp.eq.s32.totalorder %s27, 1
      %p118 = por %p116, %p117
      %p120 = scmp.ne.s32.totalorder %s103, %s119
      %p121 = scmp.eq.s32.totalorder %s27, 0
      %p122 = por %p120, %p121
      %s124 = sadd.s32 %s123, 1
      %p127 = scmp.eq.s32.totalorder %s21, 1
      %p128 = scmp.ne.s32.totalorder %s123, %s125
      %p129 = scmp.eq.s32.totalorder %s21, 0
      %p130 = por %p128, %p129
      %p131 = scmp.ne.s32.totalorder %s123, %s125
      %p132 = scmp.eq.s32.totalorder %s26, 1
      %p133 = por %p131, %p132
      %p134 = scmp.ne.s32.totalorder %s125, %s126
      %p135 = scmp.eq.s32.totalorder %s26, 0
      %p136 = por %p134, %p135
      %p137 = scmp.ne.s32.totalorder %s125, %s126
      %p138 = scmp.eq.s32.totalorder %s27, 1
      %p139 = por %p137, %p138
      %p141 = scmp.ne.s32.totalorder %s126, %s140
      %p142 = scmp.eq.s32.totalorder %s27, 0
      %p143 = por %p141, %p142
      %s145 = sadd.s32 %s144, 1
      %p148 = scmp.eq.s32.totalorder %s21, 1
      %p149 = scmp.ne.s32.totalorder %s144, %s146
      %p150 = scmp.eq.s32.totalorder %s21, 0
      %p151 = por %p149, %p150
      %p152 = scmp.ne.s32.totalorder %s144, %s146
      %p153 = scmp.eq.s32.totalorder %s26, 1
      %p154 = por %p152, %p153
      %p155 = scmp.ne.s32.totalorder %s146, %s147
      %p156 = scmp.eq.s32.totalorder %s26, 0
      %p157 = por %p155, %p156
      %p158 = scmp.ne.s32.totalorder %s146, %s147
      %p159 = scmp.eq.s32.totalorder %s27, 1
      %p160 = por %p158, %p159
      %p162 = scmp.ne.s32.totalorder %s147, %s161
      %p163 = scmp.eq.s32.totalorder %s27, 0
      %p164 = por %p162, %p163
      %s165 = ssub.s32 %s21, %s28
      %p166 = scmp.eq.s32.totalorder %s165, 0
      %s168 = sadd.s32 %s167, 1
      %s169 = scalar_select %p166, %s167, %s168
      %p172 = pneg %p166
      %p173 = scmp.eq.s32.totalorder %s21, 1
      %p174 = por %p172, %p173
      %p175 = scmp.ne.s32.totalorder %s167, %s170
      %p176 = scmp.eq.s32.totalorder %s21, 0
      %p177 = por %p175, %p176
      %p178 = scmp.ne.s32.totalorder %s167, %s170
      %p179 = scmp.eq.s32.totalorder %s26, 1
      %p180 = por %p178, %p179
      %p181 = scmp.ne.s32.totalorder %s170, %s171
      %p182 = scmp.eq.s32.totalorder %s26, 0
      %p183 = por %p181, %p182
      %p184 = scmp.ne.s32.totalorder %s170, %s171
      %p185 = scmp.eq.s32.totalorder %s27, 1
      %p186 = por %p184, %p185
      %p188 = scmp.ne.s32.totalorder %s171, %s187
      %p189 = scmp.eq.s32.totalorder %s27, 0
      %p190 = por %p188, %p189
      %s191 = ssub.s32 %s21, %s28
      %p192 = scmp.eq.s32.totalorder %s191, 0
      %s194 = sadd.s32 %s193, 1
      %s195 = scalar_select %p192, %s193, %s194
      %p198 = pneg %p192
      %p199 = scmp.eq.s32.totalorder %s21, 1
      %p200 = por %p198, %p199
      %p201 = scmp.ne.s32.totalorder %s193, %s196
      %p202 = scmp.eq.s32.totalorder %s21, 0
      %p203 = por %p201, %p202
      %p204 = scmp.ne.s32.totalorder %s193, %s196
      %p205 = scmp.eq.s32.totalorder %s26, 1
      %p206 = por %p204, %p205
      %p207 = scmp.ne.s32.totalorder %s196, %s197
      %p208 = scmp.eq.s32.totalorder %s26, 0
      %p209 = por %p207, %p208
      %p210 = scmp.ne.s32.totalorder %s196, %s197
      %p211 = scmp.eq.s32.totalorder %s27, 1
      %p212 = por %p210, %p211
      %p214 = scmp.ne.s32.totalorder %s197, %s213
      %p215 = scmp.eq.s32.totalorder %s27, 0
      %p216 = por %p214, %p215
      %p217 = scmp.le.s32.totalorder 1, %s21
      %p218 = scmp.lt.s32.totalorder %s21, 3
      %p219 = pnand %p217, %p218
      %p220 = pneg %p219
      // Predicated region
      $region9: #{tpu_custom_call.1} parent=5 // pred_check
        _
      $region10: #{tpu_custom_call.1} parent=5 // pred_check_branch
        %222 = sbr.rel (%p219) target = $region12
      $region11: #{tpu_custom_call.1} parent=5 // pred_region
        %s223 = ssub.s32 %s21, 1
        // Predicated region
        $region13: #{tpu_custom_call.1} parent=11 // pred_check
          %p224 = pneg %p42
        $region14: #{tpu_custom_call.1} parent=11 // pred_check_branch
          %226 = sbr.rel (%p224) target = $region16
        $region15: #{tpu_custom_call.1} parent=11 // pred_region
          %s228 = ssub.s32 256, 256
          %229 = vsyncadd [#allocation3], %s228
          %s231 = sshll.u32 [#allocation2], 4
          %s232 = int_to_ptr.vmem [resolvable:$true] %s231
          %234 = dma.hbm_to_vmem [thread:$0]  %s0, 256, %s232, [#allocation3]
        $region16: #{tpu_custom_call.1} parent=11 // pred_fallthru
          _
        // Predicated region
        $region17: #{tpu_custom_call.1} parent=11 // pred_check
          %p235 = pneg %p63
        $region18: #{tpu_custom_call.1} parent=11 // pred_check_branch
          %237 = sbr.rel (%p235) target = $region20
        $region19: #{tpu_custom_call.1} parent=11 // pred_region
          %s239 = ssub.s32 256, 256
          %240 = vsyncadd [#allocation6], %s239
          %s242 = sshll.u32 [#allocation5], 4
          %s243 = int_to_ptr.vmem [resolvable:$true] %s242
          %245 = dma.hbm_to_vmem [thread:$0]  %s1, 256, %s243, [#allocation6]
        $region20: #{tpu_custom_call.1} parent=11 // pred_fallthru
          _
        // Predicated region
        $region21: #{tpu_custom_call.1} parent=11 // pred_check
          %p246 = pneg %p136
        $region22: #{tpu_custom_call.1} parent=11 // pred_check_branch
          %248 = sbr.rel (%p246) target = $region24
        $region23: #{tpu_custom_call.1} parent=11 // pred_region
          %s250 = ssub.s32 8192, 8192
          %251 = vsyncadd [#allocation6], %s250
          %s252 = sshll.u32 [#allocation8], 4
          %s253 = int_to_ptr.vmem [resolvable:$true] %s252
          %258 = dma.hbm_to_vmem [thread:$0]  %s4, 8192, %s253, [#allocation6], 256, 256, 16
        $region24: #{tpu_custom_call.1} parent=11 // pred_fallthru
          _
        // Predicated region
        $region25: #{tpu_custom_call.1} parent=11 // pred_check
          %p259 = pneg %p157
        $region26: #{tpu_custom_call.1} parent=11 // pred_check_branch
          %261 = sbr.rel (%p259) target = $region28
        $region27: #{tpu_custom_call.1} parent=11 // pred_region
          _
        $region28: #{tpu_custom_call.1} parent=11 // pred_fallthru
          _
      $region12: #{tpu_custom_call.1} parent=5 // pred_fallthru
        _
      %p262 = scmp.lt.s32.totalorder %s21, 2
      // Predicated region
      $region29: #{tpu_custom_call.1} parent=5 // pred_check
        %p263 = pneg %p262
      $region30: #{tpu_custom_call.1} parent=5 // pred_check_branch
        %265 = sbr.rel (%p263) target = $region32
      $region31: #{tpu_custom_call.1} parent=5 // pred_region
        // Predicated region
        $region33: #{tpu_custom_call.1} parent=31 // pred_check
          %p266 = pneg %p83
        $region34: #{tpu_custom_call.1} parent=31 // pred_check_branch
          %268 = sbr.rel (%p266) target = $region36
        $region35: #{tpu_custom_call.1} parent=31 // pred_region
          %s269 = sand.u32 %s21, 1
          %s270 = scalar_lea.sflag [#allocation3], %s269
          %s271 = sand.u32 %s73, 1
          %s272 = smul.addr %s271, 256
          %s273 = scalar_lea.vmem [#allocation7], %s272
          %s275 = ssub.s32 4096, 4096
          %276 = vsyncadd %s270, %s275
          %s277 = smul.addr %s21, 128
          %s278 = scalar_lea.hbm %s2, %s277
          %s279 = sshll.u32 %s273, 4
          %s280 = int_to_ptr.vmem [resolvable:$true] %s279
          %285 = dma.hbm_to_vmem [thread:$0]  %s278, 4096, %s280, %s270, 256, 128, 8
        $region36: #{tpu_custom_call.1} parent=31 // pred_fallthru
          _
        // Predicated region
        $region37: #{tpu_custom_call.1} parent=31 // pred_check
          %p286 = pneg %p109
        $region38: #{tpu_custom_call.1} parent=31 // pred_check_branch
          %288 = sbr.rel (%p286) target = $region40
        $region39: #{tpu_custom_call.1} parent=31 // pred_region
          %p289 = scmp.lt.s32.totalorder %s21, 1
          %s290 = scalar_select %p289, %s21, 1
          %s291 = scalar_lea.vmem %s3, %s290
        $region40: #{tpu_custom_call.1} parent=31 // pred_fallthru
          _
        // Predicated region
        $region41: #{tpu_custom_call.1} parent=31 // pred_check
          %p292 = pneg %p177
        $region42: #{tpu_custom_call.1} parent=31 // pred_check_branch
          %294 = sbr.rel (%p292) target = $region44
        $region43: #{tpu_custom_call.1} parent=31 // pred_region
          %s295 = sand.u32 %s167, 1
          %s296 = scalar_lea.sflag [#allocation10], %s295
          %s297 = sand.u32 %s167, 1
          %s298 = smul.addr %s297, 256
          %s299 = scalar_lea.vmem [#allocation9], %s298
          %s301 = ssub.s32 4096, 4096
          %302 = vsyncadd %s296, %s301
          %s303 = smul.addr %s21, 128
          %s304 = scalar_lea.hbm %s6, %s303
          %s305 = sshll.u32 %s299, 4
          %s306 = int_to_ptr.vmem [resolvable:$true] %s305
          %311 = dma.hbm_to_vmem [thread:$0]  %s304, 4096, %s306, %s296, 256, 128, 8
        $region44: #{tpu_custom_call.1} parent=31 // pred_fallthru
          _
      $region32: #{tpu_custom_call.1} parent=5 // pred_fallthru
        _
      %p312 = scmp.le.s32.totalorder 1, %s21
      %p313 = scmp.lt.s32.totalorder %s21, 3
      %p314 = pnand %p312, %p313
      %p315 = pneg %p314
      // Predicated region
      $region45: #{tpu_custom_call.1} parent=5 // pred_check
        _
      $region46: #{tpu_custom_call.1} parent=5 // pred_check_branch
        %317 = sbr.rel (%p314) target = $region48
      $region47: #{tpu_custom_call.1} parent=5 // pred_region
        %s318 = ssub.s32 %s21, 1
        // Predicated region
        $region49: #{tpu_custom_call.1} parent=47 // pred_check
          %p319 = pneg %p42
        $region50: #{tpu_custom_call.1} parent=47 // pred_check_branch
          %321 = sbr.rel (%p319) target = $region52
        $region51: #{tpu_custom_call.1} parent=47 // pred_region
          %322 = dma.done [#allocation3], 256
        $region52: #{tpu_custom_call.1} parent=47 // pred_fallthru
          _
        // Predicated region
        $region53: #{tpu_custom_call.1} parent=47 // pred_check
          %p323 = pneg %p63
        $region54: #{tpu_custom_call.1} parent=47 // pred_check_branch
          %325 = sbr.rel (%p323) target = $region56
        $region55: #{tpu_custom_call.1} parent=47 // pred_region
          %326 = dma.done [#allocation6], 256
        $region56: #{tpu_custom_call.1} parent=47 // pred_fallthru
          _
        %s327 = sand.u32 %s26, 1
        %s328 = scalar_lea.sflag [#allocation3], %s327
        %s329 = sand.u32 %s76, 1
        %s330 = smul.addr %s329, 256
        %s331 = scalar_lea.vmem [#allocation7], %s330
        // Predicated region
        $region57: #{tpu_custom_call.1} parent=47 // pred_check
          %p332 = pneg %p89
        $region58: #{tpu_custom_call.1} parent=47 // pred_check_branch
          %334 = sbr.rel (%p332) target = $region60
        $region59: #{tpu_custom_call.1} parent=47 // pred_region
          %335 = dma.done %s328, 4096
        $region60: #{tpu_custom_call.1} parent=47 // pred_fallthru
          _
        // Predicated region
        $region61: #{tpu_custom_call.1} parent=47 // pred_check
          %p336 = pneg %p136
        $region62: #{tpu_custom_call.1} parent=47 // pred_check_branch
          %338 = sbr.rel (%p336) target = $region64
        $region63: #{tpu_custom_call.1} parent=47 // pred_region
          %339 = dma.done [#allocation6], 8192
        $region64: #{tpu_custom_call.1} parent=47 // pred_fallthru
          _
        %s340 = sand.u32 %s170, 1
        %s341 = scalar_lea.sflag [#allocation10], %s340
        %s342 = sand.u32 %s170, 1
        %s343 = smul.addr %s342, 256
        %s344 = scalar_lea.vmem [#allocation9], %s343
        // Predicated region
        $region65: #{tpu_custom_call.1} parent=47 // pred_check
          %p345 = pneg %p183
        $region66: #{tpu_custom_call.1} parent=47 // pred_check_branch
          %347 = sbr.rel (%p345) target = $region68
        $region67: #{tpu_custom_call.1} parent=47 // pred_region
          %348 = dma.done %s341, 4096
        $region68: #{tpu_custom_call.1} parent=47 // pred_fallthru
          _
        %p349 = pneg %p42
        %p350 = pneg %p39
        %p351 = pneg %p63
        %p352 = pneg %p60
        %s353 = sand.u32 %s26, 1
        %s354 = scalar_lea.sflag [#allocation3], %s353
        %s355 = sand.u32 %s76, 1
        %s356 = smul.addr %s355, 256
        %s357 = scalar_lea.vmem [#allocation7], %s356
        %p358 = pneg %p89
        %p359 = pneg %p86
        %p360 = scmp.lt.s32.totalorder %s26, 1
        %s361 = scalar_select %p360, %s26, 1
        %s362 = scalar_lea.vmem %s3, %s361
        %p363 = pneg %p115
        %p364 = pneg %p112
        %p365 = pneg %p136
        %p366 = pneg %p133
        %p367 = pneg %p157
        %p368 = pneg %p154
        %s369 = sand.u32 %s170, 1
        %s370 = scalar_lea.sflag [#allocation10], %s369
        %s371 = sand.u32 %s170, 1
        %s372 = smul.addr %s371, 256
        %s373 = scalar_lea.vmem [#allocation9], %s372
        %p374 = pneg %p183
        %p375 = pneg %p180
        %p376 = pneg %p209
        %p377 = pneg %p206
        %s378 = sand.u32 %s196, 1
        %s379 = scalar_lea.sflag [#allocation4], %s378
        %s380 = sand.u32 %s196, 1
        %s381 = smul.addr %s380, 256
        %s382 = scalar_lea.vmem [#allocation11], %s381
        %p383 = scmp.lt.s32.totalorder %s26, 1
        %s384 = scalar_select %p383, %s26, 1
        %s385 = scalar_lea.vmem %s3, %s384
        %v386 = vld [vmem:[#allocation2] sm:$0xff]
        %v387 = vld [vmem:[#allocation2 + $0x8] sm:$0xff]
        %v388 = vld [vmem:[%s331] sm:$0xff]
        %v389 = vld [vmem:[%s331 + $0x8] sm:$0xff]
        %v390 = vld [vmem:[%s331 + $0x10] sm:$0xff]
        %v391 = vld [vmem:[%s331 + $0x18] sm:$0xff]
        %v392 = vld [vmem:[%s331 + $0x20] sm:$0xff]
        %v393 = vld [vmem:[%s331 + $0x28] sm:$0xff]
        %v394 = vld [vmem:[%s331 + $0x30] sm:$0xff]
        %v395 = vld [vmem:[%s331 + $0x38] sm:$0xff]
        %v396 = vld [vmem:[%s331 + $0x40] sm:$0xff]
        %v397 = vld [vmem:[%s331 + $0x48] sm:$0xff]
        %v398 = vld [vmem:[%s331 + $0x50] sm:$0xff]
        %v399 = vld [vmem:[%s331 + $0x58] sm:$0xff]
        %v400 = vld [vmem:[%s331 + $0x60] sm:$0xff]
        %v401 = vld [vmem:[%s331 + $0x68] sm:$0xff]
        %v402 = vld [vmem:[%s331 + $0x70] sm:$0xff]
        %v403 = vld [vmem:[%s331 + $0x78] sm:$0xff]
        %v404 = vld [vmem:[%s331 + $0x80] sm:$0xff]
        %v405 = vld [vmem:[%s331 + $0x88] sm:$0xff]
        %v406 = vld [vmem:[%s331 + $0x90] sm:$0xff]
        %v407 = vld [vmem:[%s331 + $0x98] sm:$0xff]
        %v408 = vld [vmem:[%s331 + $0xa0] sm:$0xff]
        %v409 = vld [vmem:[%s331 + $0xa8] sm:$0xff]
        %v410 = vld [vmem:[%s331 + $0xb0] sm:$0xff]
        %v411 = vld [vmem:[%s331 + $0xb8] sm:$0xff]
        %v412 = vld [vmem:[%s331 + $0xc0] sm:$0xff]
        %v413 = vld [vmem:[%s331 + $0xc8] sm:$0xff]
        %v414 = vld [vmem:[%s331 + $0xd0] sm:$0xff]
        %v415 = vld [vmem:[%s331 + $0xd8] sm:$0xff]
        %v416 = vld [vmem:[%s331 + $0xe0] sm:$0xff]
        %v417 = vld [vmem:[%s331 + $0xe8] sm:$0xff]
        %v418 = vld [vmem:[%s331 + $0xf0] sm:$0xff]
        %v419 = vld [vmem:[%s331 + $0xf8] sm:$0xff]
        %v420 = vld [vmem:[%s385] sm:$0x1]
        %v422 = vlaneseq
        %v423 = vshrl.u32 %v422, 7
        %v424 = vsub.s32 0, %v423
        %v425 = vrot.slane %v420, %v424
        %427 = vmatprep.subr.mxu0 0.0
        %428 = vmatpush1.msra.mxu0 %v388
        %429 = vmatprep.subr.mxu0 0.0
        %430 = vmatpush1.msra.mxu0 %v389
        %431 = vmatprep.subr.mxu0 0.0
        %432 = vmatpush1.msra.mxu0 %v390
        %433 = vmatprep.subr.mxu0 0.0
        %434 = vmatpush1.msra.mxu0 %v391
        %435 = vmatprep.subr.mxu0 0.0
        %436 = vmatpush1.msra.mxu0 %v392
        %437 = vmatprep.subr.mxu0 0.0
        %438 = vmatpush1.msra.mxu0 %v393
        %439 = vmatprep.subr.mxu0 0.0
        %440 = vmatpush1.msra.mxu0 %v394
        %441 = vmatprep.subr.mxu0 0.0
        %442 = vmatpush1.msra.mxu0 %v395
        %443 = vmatprep.subr.mxu0 0.0
        %444 = vmatpush1.msra.mxu0 %v396
        %445 = vmatprep.subr.mxu0 0.0
        %446 = vmatpush1.msra.mxu0 %v397
        %447 = vmatprep.subr.mxu0 0.0
        %448 = vmatpush1.msra.mxu0 %v398
        %449 = vmatprep.subr.mxu0 0.0
        %450 = vmatpush1.msra.mxu0 %v399
        %451 = vmatprep.subr.mxu0 0.0
        %452 = vmatpush1.msra.mxu0 %v400
        %453 = vmatprep.subr.mxu0 0.0
        %454 = vmatpush1.msra.mxu0 %v401
        %455 = vmatprep.subr.mxu0 0.0
        %456 = vmatpush1.msra.mxu0 %v402
        %457 = vmatprep.subr.mxu0 0.0
        %458 = vmatpush1.msra.mxu0 %v403
        %459 = vmatprep.subr.mxu0 0.0
        %460 = vmatpush1.msra.mxu0 %v404
        %461 = vmatprep.subr.mxu0 0.0
        %462 = vmatpush1.msra.mxu0 %v405
        %463 = vmatprep.subr.mxu0 0.0
        %464 = vmatpush1.msra.mxu0 %v406
        %465 = vmatprep.subr.mxu0 0.0
        %466 = vmatpush1.msra.mxu0 %v407
        %467 = vmatprep.subr.mxu0 0.0
        %468 = vmatpush1.msra.mxu0 %v408
        %469 = vmatprep.subr.mxu0 0.0
        %470 = vmatpush1.msra.mxu0 %v409
        %471 = vmatprep.subr.mxu0 0.0
        %472 = vmatpush1.msra.mxu0 %v410
        %473 = vmatprep.subr.mxu0 0.0
        %474 = vmatpush1.msra.mxu0 %v411
        %475 = vmatprep.subr.mxu0 0.0
        %476 = vmatpush1.msra.mxu0 %v412
        %477 = vmatprep.subr.mxu0 0.0
        %478 = vmatpush1.msra.mxu0 %v413
        %479 = vmatprep.subr.mxu0 0.0
        %480 = vmatpush1.msra.mxu0 %v414
        %481 = vmatprep.subr.mxu0 0.0
        %482 = vmatpush1.msra.mxu0 %v415
        %483 = vmatprep.subr.mxu0 0.0
        %484 = vmatpush1.msra.mxu0 %v416
        %485 = vmatprep.subr.mxu0 0.0
        %486 = vmatpush1.msra.mxu0 %v417
        %487 = vmatprep.subr.mxu0 0.0
        %488 = vmatpush1.msra.mxu0 %v418
        %489 = vmatprep.subr.mxu0 0.0
        %490 = vmatpush1.msra.mxu0 %v419
        %491 = vmatprep.mubr.f32.mxu0 %v387
        %492 = vmatmul.mubr.f32.gmra.mrb[0].mxu0 %v386
        %v493 = vpop.f32.mrb[0].mxu0
        %v494 = vadd.f32 %v425, %v493
        %v495 = vpop.f32.mrb[0].mxu0
        %496 = vdwg.mxu0
        %v497 = vld [vmem:[#allocation5] sm:$0xff]
        %v498 = vld [vmem:[#allocation5 + $0x8] sm:$0xff]
        %v499 = vld [vmem:[#allocation8] sm:$0xff]
        %v500 = vld [vmem:[#allocation8 + $0x8] sm:$0xff]
        %v501 = vld [vmem:[#allocation8 + $0x10] sm:$0xff]
        %v502 = vld [vmem:[#allocation8 + $0x18] sm:$0xff]
        %v503 = vld [vmem:[#allocation8 + $0x20] sm:$0xff]
        %v504 = vld [vmem:[#allocation8 + $0x28] sm:$0xff]
        %v505 = vld [vmem:[#allocation8 + $0x30] sm:$0xff]
        %v506 = vld [vmem:[#allocation8 + $0x38] sm:$0xff]
        %v507 = vld [vmem:[#allocation8 + $0x40] sm:$0xff]
        %v508 = vld [vmem:[#allocation8 + $0x48] sm:$0xff]
        %v509 = vld [vmem:[#allocation8 + $0x50] sm:$0xff]
        %v510 = vld [vmem:[#allocation8 + $0x58] sm:$0xff]
        %v511 = vld [vmem:[#allocation8 + $0x60] sm:$0xff]
        %v512 = vld [vmem:[#allocation8 + $0x68] sm:$0xff]
        %v513 = vld [vmem:[#allocation8 + $0x70] sm:$0xff]
        %v514 = vld [vmem:[#allocation8 + $0x78] sm:$0xff]
        %v515 = vld [vmem:[#allocation8 + $0x80] sm:$0xff]
        %v516 = vld [vmem:[#allocation8 + $0x88] sm:$0xff]
        %v517 = vld [vmem:[#allocation8 + $0x90] sm:$0xff]
        %v518 = vld [vmem:[#allocation8 + $0x98] sm:$0xff]
        %v519 = vld [vmem:[#allocation8 + $0xa0] sm:$0xff]
        %v520 = vld [vmem:[#allocation8 + $0xa8] sm:$0xff]
        %v521 = vld [vmem:[#allocation8 + $0xb0] sm:$0xff]
        %v522 = vld [vmem:[#allocation8 + $0xb8] sm:$0xff]
        %v523 = vld [vmem:[#allocation8 + $0xc0] sm:$0xff]
        %v524 = vld [vmem:[#allocation8 + $0xc8] sm:$0xff]
        %v525 = vld [vmem:[#allocation8 + $0xd0] sm:$0xff]
        %v526 = vld [vmem:[#allocation8 + $0xd8] sm:$0xff]
        %v527 = vld [vmem:[#allocation8 + $0xe0] sm:$0xff]
        %v528 = vld [vmem:[#allocation8 + $0xe8] sm:$0xff]
        %v529 = vld [vmem:[#allocation8 + $0xf0] sm:$0xff]
        %v530 = vld [vmem:[#allocation8 + $0xf8] sm:$0xff]
        %v531 = vld [vmem:[#allocation8 + $0x100] sm:$0xff]
        %v532 = vld [vmem:[#allocation8 + $0x108] sm:$0xff]
        %v533 = vld [vmem:[#allocation8 + $0x110] sm:$0xff]
        %v534 = vld [vmem:[#allocation8 + $0x118] sm:$0xff]
        %v535 = vld [vmem:[#allocation8 + $0x120] sm:$0xff]
        %v536 = vld [vmem:[#allocation8 + $0x128] sm:$0xff]
        %v537 = vld [vmem:[#allocation8 + $0x130] sm:$0xff]
        %v538 = vld [vmem:[#allocation8 + $0x138] sm:$0xff]
        %v539 = vld [vmem:[#allocation8 + $0x140] sm:$0xff]
        %v540 = vld [vmem:[#allocation8 + $0x148] sm:$0xff]
        %v541 = vld [vmem:[#allocation8 + $0x150] sm:$0xff]
        %v542 = vld [vmem:[#allocation8 + $0x158] sm:$0xff]
        %v543 = vld [vmem:[#allocation8 + $0x160] sm:$0xff]
        %v544 = vld [vmem:[#allocation8 + $0x168] sm:$0xff]
        %v545 = vld [vmem:[#allocation8 + $0x170] sm:$0xff]
        %v546 = vld [vmem:[#allocation8 + $0x178] sm:$0xff]
        %v547 = vld [vmem:[#allocation8 + $0x180] sm:$0xff]
        %v548 = vld [vmem:[#allocation8 + $0x188] sm:$0xff]
        %v549 = vld [vmem:[#allocation8 + $0x190] sm:$0xff]
        %v550 = vld [vmem:[#allocation8 + $0x198] sm:$0xff]
        %v551 = vld [vmem:[#allocation8 + $0x1a0] sm:$0xff]
        %v552 = vld [vmem:[#allocation8 + $0x1a8] sm:$0xff]
        %v553 = vld [vmem:[#allocation8 + $0x1b0] sm:$0xff]
        %v554 = vld [vmem:[#allocation8 + $0x1b8] sm:$0xff]
        %v555 = vld [vmem:[#allocation8 + $0x1c0] sm:$0xff]
        %v556 = vld [vmem:[#allocation8 + $0x1c8] sm:$0xff]
        %v557 = vld [vmem:[#allocation8 + $0x1d0] sm:$0xff]
        %v558 = vld [vmem:[#allocation8 + $0x1d8] sm:$0xff]
        %v559 = vld [vmem:[#allocation8 + $0x1e0] sm:$0xff]
        %v560 = vld [vmem:[#allocation8 + $0x1e8] sm:$0xff]
        %v561 = vld [vmem:[#allocation8 + $0x1f0] sm:$0xff]
        %v562 = vld [vmem:[#allocation8 + $0x1f8] sm:$0xff]
        %v563 = vld [vmem:[%s5] sm:$0x3]
        %v565 = vlaneseq
        %v566 = vshrl.u32 %v565, 7
        %v567 = vsub.s32 0, %v566
        %v568 = vrot.slane %v563, %v567
        %v569 = vlaneseq
        %v570 = vshrl.u32 %v569, 7
        %v571 = vsub.s32 1, %v570
        %v572 = vrot.slane %v563, %v571
        %575 = vmatprep.subr.mxu0 %v500
        %576 = vmatpush1.msra.mxu0 %v499
        %577 = vmatprep.subr.mxu0 %v502
        %578 = vmatpush1.msra.mxu0 %v501
        %579 = vmatprep.subr.mxu0 %v504
        %580 = vmatpush1.msra.mxu0 %v503
        %581 = vmatprep.subr.mxu0 %v506
        %582 = vmatpush1.msra.mxu0 %v505
        %583 = vmatprep.subr.mxu0 %v508
        %584 = vmatpush1.msra.mxu0 %v507
        %585 = vmatprep.subr.mxu0 %v510
        %586 = vmatpush1.msra.mxu0 %v509
        %587 = vmatprep.subr.mxu0 %v512
        %588 = vmatpush1.msra.mxu0 %v511
        %589 = vmatprep.subr.mxu0 %v514
        %590 = vmatpush1.msra.mxu0 %v513
        %591 = vmatprep.subr.mxu0 %v516
        %592 = vmatpush1.msra.mxu0 %v515
        %593 = vmatprep.subr.mxu0 %v518
        %594 = vmatpush1.msra.mxu0 %v517
        %595 = vmatprep.subr.mxu0 %v520
        %596 = vmatpush1.msra.mxu0 %v519
        %597 = vmatprep.subr.mxu0 %v522
        %598 = vmatpush1.msra.mxu0 %v521
        %599 = vmatprep.subr.mxu0 %v524
        %600 = vmatpush1.msra.mxu0 %v523
        %601 = vmatprep.subr.mxu0 %v526
        %602 = vmatpush1.msra.mxu0 %v525
        %603 = vmatprep.subr.mxu0 %v528
        %604 = vmatpush1.msra.mxu0 %v527
        %605 = vmatprep.subr.mxu0 %v530
        %606 = vmatpush1.msra.mxu0 %v529
        %607 = vmatprep.subr.mxu0 %v532
        %608 = vmatpush1.msra.mxu0 %v531
        %609 = vmatprep.subr.mxu0 %v534
        %610 = vmatpush1.msra.mxu0 %v533
        %611 = vmatprep.subr.mxu0 %v536
        %612 = vmatpush1.msra.mxu0 %v535
        %613 = vmatprep.subr.mxu0 %v538
        %614 = vmatpush1.msra.mxu0 %v537
        %615 = vmatprep.subr.mxu0 %v540
        %616 = vmatpush1.msra.mxu0 %v539
        %617 = vmatprep.subr.mxu0 %v542
        %618 = vmatpush1.msra.mxu0 %v541
        %619 = vmatprep.subr.mxu0 %v544
        %620 = vmatpush1.msra.mxu0 %v543
        %621 = vmatprep.subr.mxu0 %v546
        %622 = vmatpush1.msra.mxu0 %v545
        %623 = vmatprep.subr.mxu0 %v548
        %624 = vmatpush1.msra.mxu0 %v547
        %625 = vmatprep.subr.mxu0 %v550
        %626 = vmatpush1.msra.mxu0 %v549
        %627 = vmatprep.subr.mxu0 %v552
        %628 = vmatpush1.msra.mxu0 %v551
        %629 = vmatprep.subr.mxu0 %v554
        %630 = vmatpush1.msra.mxu0 %v553
        %631 = vmatprep.subr.mxu0 %v556
        %632 = vmatpush1.msra.mxu0 %v555
        %633 = vmatprep.subr.mxu0 %v558
        %634 = vmatpush1.msra.mxu0 %v557
        %635 = vmatprep.subr.mxu0 %v560
        %636 = vmatpush1.msra.mxu0 %v559
        %637 = vmatprep.subr.mxu0 %v562
        %638 = vmatpush1.msra.mxu0 %v561
        %639 = vmatprep.mubr.f32.mxu0 %v498
        %640 = vmatmul.mubr.f32.gmra.mrb[0].mxu0 %v497
        %v641 = vpop.f32.mrb[0].mxu0
        %v642 = vadd.f32 %v568, %v641
        %v643 = vpop.f32.mrb[0].mxu0
        %v644 = vadd.f32 %v572, %v643
        %645 = vdwg.mxu0
        %v646 = vlaneseq
        %v647 = vand.u32 %v646, 127
        %v648 = vadd.s32 %v647, 128
        %649 = vrot.lane.b32.xlu0 %v642, 1
        %v650 = vpop.permute.xlu0 %649
        %651 = vrot.lane.b32.xlu0 %v644, 1
        %v652 = vpop.permute.xlu0 %651
        %vm653 = vcmp.lt.s32.totalorder %v647, 1
        %v654 = vsel %vm653, %v650, %v652
        %v655 = vsel %vm653, %v652, %v650
        %656 = vrot.lane.b32.xlu0 %v647, 1
        %v657 = vpop.permute.xlu0 %656
        %658 = vrot.lane.b32.xlu0 %v648, 1
        %v659 = vpop.permute.xlu0 %658
        %v660 = vsel %vm653, %v657, %v659
        %v661 = vsel %vm653, %v659, %v657
        %v662 = vsub.s32 %v661, %v647
        %v663 = vsub.s32 %v660, %v648
        %vm664 = vcmp.lt.s32.totalorder %v662, 0
        %v665 = vsub.s32 0, %v662
        %v666 = vsel %vm664, %v665, %v662
        %vm667 = vcmp.lt.s32.totalorder %v663, 0
        %v668 = vsub.s32 0, %v663
        %v669 = vsel %vm667, %v668, %v663
        %vm670 = vcmp.lt.s32.totalorder %v666, 4
        %vm671 = vcmp.lt.s32.totalorder %v669, 4
        %v672 = vsel %vm670, %v655, 0.0
        %v673 = vsel %vm671, %v654, 0.0
        %v674 = vadd.f32 %v642, %v672
        %v675 = vadd.f32 %v644, %v673
        %676 = vrot.lane.b32.xlu0 %v642, 127
        %v677 = vpop.permute.xlu0 %676
        %678 = vrot.lane.b32.xlu0 %v644, 127
        %v679 = vpop.permute.xlu0 %678
        %vm680 = vcmp.lt.s32.totalorder %v647, 127
        %v681 = vsel %vm680, %v677, %v679
        %v682 = vsel %vm680, %v679, %v677
        %683 = vrot.lane.b32.xlu0 %v647, 127
        %v684 = vpop.permute.xlu0 %683
        %685 = vrot.lane.b32.xlu0 %v648, 127
        %v686 = vpop.permute.xlu0 %685
        %v687 = vsel %vm680, %v684, %v686
        %v688 = vsel %vm680, %v686, %v684
        %v689 = vsub.s32 %v687, %v647
        %v690 = vsub.s32 %v688, %v648
        %vm691 = vcmp.lt.s32.totalorder %v689, 0
        %v692 = vsub.s32 0, %v689
        %v693 = vsel %vm691, %v692, %v689
        %vm694 = vcmp.lt.s32.totalorder %v690, 0
        %v695 = vsub.s32 0, %v690
        %v696 = vsel %vm694, %v695, %v690
        %vm697 = vcmp.lt.s32.totalorder %v693, 4
        %vm698 = vcmp.lt.s32.totalorder %v696, 4
        %v699 = vsel %vm697, %v681, 0.0
        %v700 = vsel %vm698, %v682, 0.0
        %v701 = vadd.f32 %v674, %v699
        %v702 = vadd.f32 %v675, %v700
        %703 = vrot.lane.b32.xlu0 %v642, 2
        %v704 = vpop.permute.xlu0 %703
        %705 = vrot.lane.b32.xlu0 %v644, 2
        %v706 = vpop.permute.xlu0 %705
        %vm707 = vcmp.lt.s32.totalorder %v647, 2
        %v708 = vsel %vm707, %v704, %v706
        %v709 = vsel %vm707, %v706, %v704
        %710 = vrot.lane.b32.xlu0 %v647, 2
        %v711 = vpop.permute.xlu0 %710
        %712 = vrot.lane.b32.xlu0 %v648, 2
        %v713 = vpop.permute.xlu0 %712
        %v714 = vsel %vm707, %v711, %v713
        %v715 = vsel %vm707, %v713, %v711
        %v716 = vsub.s32 %v715, %v647
        %v717 = vsub.s32 %v714, %v648
        %vm718 = vcmp.lt.s32.totalorder %v716, 0
        %v719 = vsub.s32 0, %v716
        %v720 = vsel %vm718, %v719, %v716
        %vm721 = vcmp.lt.s32.totalorder %v717, 0
        %v722 = vsub.s32 0, %v717
        %v723 = vsel %vm721, %v722, %v717
        %vm724 = vcmp.lt.s32.totalorder %v720, 4
        %vm725 = vcmp.lt.s32.totalorder %v723, 4
        %v726 = vsel %vm724, %v709, 0.0
        %v727 = vsel %vm725, %v708, 0.0
        %v728 = vadd.f32 %v701, %v726
        %v729 = vadd.f32 %v702, %v727
        %730 = vrot.lane.b32.xlu0 %v642, 126
        %v731 = vpop.permute.xlu0 %730
        %732 = vrot.lane.b32.xlu0 %v644, 126
        %v733 = vpop.permute.xlu0 %732
        %vm734 = vcmp.lt.s32.totalorder %v647, 126
        %v735 = vsel %vm734, %v731, %v733
        %v736 = vsel %vm734, %v733, %v731
        %737 = vrot.lane.b32.xlu0 %v647, 126
        %v738 = vpop.permute.xlu0 %737
        %739 = vrot.lane.b32.xlu0 %v648, 126
        %v740 = vpop.permute.xlu0 %739
        %v741 = vsel %vm734, %v738, %v740
        %v742 = vsel %vm734, %v740, %v738
        %v743 = vsub.s32 %v741, %v647
        %v744 = vsub.s32 %v742, %v648
        %vm745 = vcmp.lt.s32.totalorder %v743, 0
        %v746 = vsub.s32 0, %v743
        %v747 = vsel %vm745, %v746, %v743
        %vm748 = vcmp.lt.s32.totalorder %v744, 0
        %v749 = vsub.s32 0, %v744
        %v750 = vsel %vm748, %v749, %v744
        %vm751 = vcmp.lt.s32.totalorder %v747, 4
        %vm752 = vcmp.lt.s32.totalorder %v750, 4
        %v753 = vsel %vm751, %v735, 0.0
        %v754 = vsel %vm752, %v736, 0.0
        %v755 = vadd.f32 %v728, %v753
        %v756 = vadd.f32 %v729, %v754
        %757 = vrot.lane.b32.xlu0 %v642, 3
        %v758 = vpop.permute.xlu0 %757
        %759 = vrot.lane.b32.xlu0 %v644, 3
        %v760 = vpop.permute.xlu0 %759
        %vm761 = vcmp.lt.s32.totalorder %v647, 3
        %v762 = vsel %vm761, %v758, %v760
        %v763 = vsel %vm761, %v760, %v758
        %764 = vrot.lane.b32.xlu0 %v647, 3
        %v765 = vpop.permute.xlu0 %764
        %766 = vrot.lane.b32.xlu0 %v648, 3
        %v767 = vpop.permute.xlu0 %766
        %v768 = vsel %vm761, %v765, %v767
        %v769 = vsel %vm761, %v767, %v765
        %v770 = vsub.s32 %v769, %v647
        %v771 = vsub.s32 %v768, %v648
        %vm772 = vcmp.lt.s32.totalorder %v770, 0
        %v773 = vsub.s32 0, %v770
        %v774 = vsel %vm772, %v773, %v770
        %vm775 = vcmp.lt.s32.totalorder %v771, 0
        %v776 = vsub.s32 0, %v771
        %v777 = vsel %vm775, %v776, %v771
        %vm778 = vcmp.lt.s32.totalorder %v774, 4
        %vm779 = vcmp.lt.s32.totalorder %v777, 4
        %v780 = vsel %vm778, %v763, 0.0
        %v781 = vsel %vm779, %v762, 0.0
        %v782 = vadd.f32 %v755, %v780
        %v783 = vadd.f32 %v756, %v781
        %784 = vrot.lane.b32.xlu0 %v642, 125
        %v785 = vpop.permute.xlu0 %784
        %786 = vrot.lane.b32.xlu0 %v644, 125
        %v787 = vpop.permute.xlu0 %786
        %vm788 = vcmp.lt.s32.totalorder %v647, 125
        %v789 = vsel %vm788, %v785, %v787
        %v790 = vsel %vm788, %v787, %v785
        %791 = vrot.lane.b32.xlu0 %v647, 125
        %v792 = vpop.permute.xlu0 %791
        %793 = vrot.lane.b32.xlu0 %v648, 125
        %v794 = vpop.permute.xlu0 %793
        %v795 = vsel %vm788, %v792, %v794
        %v796 = vsel %vm788, %v794, %v792
        %v797 = vsub.s32 %v795, %v647
        %v798 = vsub.s32 %v796, %v648
        %vm799 = vcmp.lt.s32.totalorder %v797, 0
        %v800 = vsub.s32 0, %v797
        %v801 = vsel %vm799, %v800, %v797
        %vm802 = vcmp.lt.s32.totalorder %v798, 0
        %v803 = vsub.s32 0, %v798
        %v804 = vsel %vm802, %v803, %v798
        %vm805 = vcmp.lt.s32.totalorder %v801, 4
        %vm806 = vcmp.lt.s32.totalorder %v804, 4
        %v807 = vsel %vm805, %v789, 0.0
        %v808 = vsel %vm806, %v790, 0.0
        %v809 = vadd.f32 %v782, %v807
        %v810 = vadd.f32 %v783, %v808
        %v811 = vld [vmem:[%s344] sm:$0xff]
        %v812 = vld [vmem:[%s344 + $0x8] sm:$0xff]
        %v813 = vld [vmem:[%s344 + $0x10] sm:$0xff]
        %v814 = vld [vmem:[%s344 + $0x18] sm:$0xff]
        %v815 = vld [vmem:[%s344 + $0x20] sm:$0xff]
        %v816 = vld [vmem:[%s344 + $0x28] sm:$0xff]
        %v817 = vld [vmem:[%s344 + $0x30] sm:$0xff]
        %v818 = vld [vmem:[%s344 + $0x38] sm:$0xff]
        %v819 = vld [vmem:[%s344 + $0x40] sm:$0xff]
        %v820 = vld [vmem:[%s344 + $0x48] sm:$0xff]
        %v821 = vld [vmem:[%s344 + $0x50] sm:$0xff]
        %v822 = vld [vmem:[%s344 + $0x58] sm:$0xff]
        %v823 = vld [vmem:[%s344 + $0x60] sm:$0xff]
        %v824 = vld [vmem:[%s344 + $0x68] sm:$0xff]
        %v825 = vld [vmem:[%s344 + $0x70] sm:$0xff]
        %v826 = vld [vmem:[%s344 + $0x78] sm:$0xff]
        %v827 = vld [vmem:[%s344 + $0x80] sm:$0xff]
        %v828 = vld [vmem:[%s344 + $0x88] sm:$0xff]
        %v829 = vld [vmem:[%s344 + $0x90] sm:$0xff]
        %v830 = vld [vmem:[%s344 + $0x98] sm:$0xff]
        %v831 = vld [vmem:[%s344 + $0xa0] sm:$0xff]
        %v832 = vld [vmem:[%s344 + $0xa8] sm:$0xff]
        %v833 = vld [vmem:[%s344 + $0xb0] sm:$0xff]
        %v834 = vld [vmem:[%s344 + $0xb8] sm:$0xff]
        %v835 = vld [vmem:[%s344 + $0xc0] sm:$0xff]
        %v836 = vld [vmem:[%s344 + $0xc8] sm:$0xff]
        %v837 = vld [vmem:[%s344 + $0xd0] sm:$0xff]
        %v838 = vld [vmem:[%s344 + $0xd8] sm:$0xff]
        %v839 = vld [vmem:[%s344 + $0xe0] sm:$0xff]
        %v840 = vld [vmem:[%s344 + $0xe8] sm:$0xff]
        %v841 = vld [vmem:[%s344 + $0xf0] sm:$0xff]
        %v842 = vld [vmem:[%s344 + $0xf8] sm:$0xff]
        %843 = vxpose.xlu0.b32.start [1/16] %v809, 128
        %844 = vxpose.xlu0.b32.cont [2/16] 0.0, 128
        %845 = vxpose.xlu0.b32.cont [3/16] 0.0, 128
        %846 = vxpose.xlu0.b32.cont [4/16] 0.0, 128
        %847 = vxpose.xlu0.b32.cont [5/16] 0.0, 128
        %848 = vxpose.xlu0.b32.cont [6/16] 0.0, 128
        %849 = vxpose.xlu0.b32.cont [7/16] 0.0, 128
        %850 = vxpose.xlu0.b32.cont [8/16] 0.0, 128
        %851 = vxpose.xlu0.b32.cont [9/16] 0.0, 128
        %852 = vxpose.xlu0.b32.cont [10/16] 0.0, 128
        %853 = vxpose.xlu0.b32.cont [11/16] 0.0, 128
        %854 = vxpose.xlu0.b32.cont [12/16] 0.0, 128
        %855 = vxpose.xlu0.b32.cont [13/16] 0.0, 128
        %856 = vxpose.xlu0.b32.cont [14/16] 0.0, 128
        %857 = vxpose.xlu0.b32.cont [15/16] 0.0, 128
        %858 = vxpose.xlu0.b32.end [16/16] 0.0, 128
        %v859 = vpop.trf.xlu0
        %v860 = vpop.trf.xlu0
        %v861 = vpop.trf.xlu0
        %v862 = vpop.trf.xlu0
        %v863 = vpop.trf.xlu0
        %v864 = vpop.trf.xlu0
        %v865 = vpop.trf.xlu0
        %v866 = vpop.trf.xlu0
        %v867 = vpop.trf.xlu0
        %v868 = vpop.trf.xlu0
        %v869 = vpop.trf.xlu0
        %v870 = vpop.trf.xlu0
        %v871 = vpop.trf.xlu0
        %v872 = vpop.trf.xlu0
        %v873 = vpop.trf.xlu0
        %v874 = vpop.trf.xlu0
        %875 = vxpose.xlu0.b32.start [1/16] %v810, 128
        %876 = vxpose.xlu0.b32.cont [2/16] 0.0, 128
        %877 = vxpose.xlu0.b32.cont [3/16] 0.0, 128
        %878 = vxpose.xlu0.b32.cont [4/16] 0.0, 128
        %879 = vxpose.xlu0.b32.cont [5/16] 0.0, 128
        %880 = vxpose.xlu0.b32.cont [6/16] 0.0, 128
        %881 = vxpose.xlu0.b32.cont [7/16] 0.0, 128
        %882 = vxpose.xlu0.b32.cont [8/16] 0.0, 128
        %883 = vxpose.xlu0.b32.cont [9/16] 0.0, 128
        %884 = vxpose.xlu0.b32.cont [10/16] 0.0, 128
        %885 = vxpose.xlu0.b32.cont [11/16] 0.0, 128
        %886 = vxpose.xlu0.b32.cont [12/16] 0.0, 128
        %887 = vxpose.xlu0.b32.cont [13/16] 0.0, 128
        %888 = vxpose.xlu0.b32.cont [14/16] 0.0, 128
        %889 = vxpose.xlu0.b32.cont [15/16] 0.0, 128
        %890 = vxpose.xlu0.b32.end [16/16] 0.0, 128
        %v891 = vpop.trf.xlu0
        %v892 = vpop.trf.xlu0
        %v893 = vpop.trf.xlu0
        %v894 = vpop.trf.xlu0
        %v895 = vpop.trf.xlu0
        %v896 = vpop.trf.xlu0
        %v897 = vpop.trf.xlu0
        %v898 = vpop.trf.xlu0
        %v899 = vpop.trf.xlu0
        %v900 = vpop.trf.xlu0
        %v901 = vpop.trf.xlu0
        %v902 = vpop.trf.xlu0
        %v903 = vpop.trf.xlu0
        %v904 = vpop.trf.xlu0
        %v905 = vpop.trf.xlu0
        %v906 = vpop.trf.xlu0
        %vm907 = vcmask 64512
        %v909 = vsel %vm907, %v859, 0
        %v912 = vsel %vm907, %v860, 0
        %v915 = vsel %vm907, %v861, 0
        %v918 = vsel %vm907, %v862, 0
        %v921 = vsel %vm907, %v863, 0
        %v924 = vsel %vm907, %v864, 0
        %v927 = vsel %vm907, %v865, 0
        %v930 = vsel %vm907, %v866, 0
        %v933 = vsel %vm907, %v867, 0
        %v936 = vsel %vm907, %v868, 0
        %v939 = vsel %vm907, %v869, 0
        %v942 = vsel %vm907, %v870, 0
        %v945 = vsel %vm907, %v871, 0
        %v948 = vsel %vm907, %v872, 0
        %v951 = vsel %vm907, %v873, 0
        %v954 = vsel %vm907, %v874, 0
        %v957 = vsel %vm907, %v891, 0
        %v960 = vsel %vm907, %v892, 0
        %v963 = vsel %vm907, %v893, 0
        %v966 = vsel %vm907, %v894, 0
        %v969 = vsel %vm907, %v895, 0
        %v972 = vsel %vm907, %v896, 0
        %v975 = vsel %vm907, %v897, 0
        %v978 = vsel %vm907, %v898, 0
        %v981 = vsel %vm907, %v899, 0
        %v984 = vsel %vm907, %v900, 0
        %v987 = vsel %vm907, %v901, 0
        %v990 = vsel %vm907, %v902, 0
        %v993 = vsel %vm907, %v903, 0
        %v996 = vsel %vm907, %v904, 0
        %v999 = vsel %vm907, %v905, 0
        %v1002 = vsel %vm907, %v906, 0
        %1004 = vmatprep.subr.mxu0 0.0
        %1005 = vmatpush1.msra.mxu0 %v494
        %1006 = vmatprep.subr.mxu0 0.0
        %1007 = vmatpush1.msra.mxu0 0.0
        %1008 = vmatprep.subr.mxu0 0.0
        %1009 = vmatpush1.msra.mxu0 0.0
        %1010 = vmatprep.subr.mxu0 0.0
        %1011 = vmatpush1.msra.mxu0 0.0
        %1012 = vmatprep.subr.mxu0 0.0
        %1013 = vmatpush1.msra.mxu0 0.0
        %1014 = vmatprep.subr.mxu0 0.0
        %1015 = vmatpush1.msra.mxu0 0.0
        %1016 = vmatprep.subr.mxu0 0.0
        %1017 = vmatpush1.msra.mxu0 0.0
        %1018 = vmatprep.subr.mxu0 0.0
        %1019 = vmatpush1.msra.mxu0 0.0
        %1020 = vmatprep.subr.mxu0 0.0
        %1021 = vmatpush1.msra.mxu0 0.0
        %1022 = vmatprep.subr.mxu0 0.0
        %1023 = vmatpush1.msra.mxu0 0.0
        %1024 = vmatprep.subr.mxu0 0.0
        %1025 = vmatpush1.msra.mxu0 0.0
        %1026 = vmatprep.subr.mxu0 0.0
        %1027 = vmatpush1.msra.mxu0 0.0
        %1028 = vmatprep.subr.mxu0 0.0
        %1029 = vmatpush1.msra.mxu0 0.0
        %1030 = vmatprep.subr.mxu0 0.0
        %1031 = vmatpush1.msra.mxu0 0.0
        %1032 = vmatprep.subr.mxu0 0.0
        %1033 = vmatpush1.msra.mxu0 0.0
        %1034 = vmatprep.subr.mxu0 0.0
        %1035 = vmatpush1.msra.mxu0 0.0
        %1036 = vmatprep.subr.mxu0 0.0
        %1037 = vmatpush1.msra.mxu0 0.0
        %1038 = vmatprep.subr.mxu0 0.0
        %1039 = vmatpush1.msra.mxu0 0.0
        %1040 = vmatprep.subr.mxu0 0.0
        %1041 = vmatpush1.msra.mxu0 0.0
        %1042 = vmatprep.subr.mxu0 0.0
        %1043 = vmatpush1.msra.mxu0 0.0
        %1044 = vmatprep.subr.mxu0 0.0
        %1045 = vmatpush1.msra.mxu0 0.0
        %1046 = vmatprep.subr.mxu0 0.0
        %1047 = vmatpush1.msra.mxu0 0.0
        %1048 = vmatprep.subr.mxu0 0.0
        %1049 = vmatpush1.msra.mxu0 0.0
        %1050 = vmatprep.subr.mxu0 0.0
        %1051 = vmatpush1.msra.mxu0 0.0
        %1052 = vmatprep.subr.mxu0 0.0
        %1053 = vmatpush1.msra.mxu0 0.0
        %1054 = vmatprep.subr.mxu0 0.0
        %1055 = vmatpush1.msra.mxu0 0.0
        %1056 = vmatprep.subr.mxu0 0.0
        %1057 = vmatpush1.msra.mxu0 0.0
        %1058 = vmatprep.subr.mxu0 0.0
        %1059 = vmatpush1.msra.mxu0 0.0
        %1060 = vmatprep.subr.mxu0 0.0
        %1061 = vmatpush1.msra.mxu0 0.0
        %1062 = vmatprep.subr.mxu0 0.0
        %1063 = vmatpush1.msra.mxu0 0.0
        %1064 = vmatprep.subr.mxu0 0.0
        %1065 = vmatpush1.msra.mxu0 0.0
        %1066 = vmatprep.subr.mxu0 0.0
        %1067 = vmatpush1.msra.mxu0 0.0
        %1068 = vmatprep.mubr.f32.mxu0 0.0
        %1069 = vmatmul.mubr.f32.gmra.mrb[0].mxu0 %v909
        %v1070 = vpop.f32.mrb[0].mxu0
        %v1071 = vadd.f32 %v811, %v1070
        %v1072 = vpop.f32.mrb[0].mxu0
        %1073 = vmatprep.mubr.f32.mxu0 0.0
        %1074 = vmatmul.mubr.f32.gmra.mrb[0].mxu0 %v912
        %v1075 = vpop.f32.mrb[0].mxu0
        %v1076 = vadd.f32 %v812, %v1075
        %v1077 = vpop.f32.mrb[0].mxu0
        %1078 = vmatprep.mubr.f32.mxu0 0.0
        %1079 = vmatmul.mubr.f32.gmra.mrb[0].mxu0 %v915
        %v1080 = vpop.f32.mrb[0].mxu0
        %v1081 = vadd.f32 %v813, %v1080
        %v1082 = vpop.f32.mrb[0].mxu0
        %1083 = vmatprep.mubr.f32.mxu0 0.0
        %1084 = vmatmul.mubr.f32.gmra.mrb[0].mxu0 %v918
        %v1085 = vpop.f32.mrb[0].mxu0
        %v1086 = vadd.f32 %v814, %v1085
        %v1087 = vpop.f32.mrb[0].mxu0
        %1088 = vmatprep.mubr.f32.mxu0 0.0
        %1089 = vmatmul.mubr.f32.gmra.mrb[0].mxu0 %v921
        %v1090 = vpop.f32.mrb[0].mxu0
        %v1091 = vadd.f32 %v815, %v1090
        %v1092 = vpop.f32.mrb[0].mxu0
        %1093 = vmatprep.mubr.f32.mxu0 0.0
        %1094 = vmatmul.mubr.f32.gmra.mrb[0].mxu0 %v924
        %v1095 = vpop.f32.mrb[0].mxu0
        %v1096 = vadd.f32 %v816, %v1095
        %v1097 = vpop.f32.mrb[0].mxu0
        %1098 = vmatprep.mubr.f32.mxu0 0.0
        %1099 = vmatmul.mubr.f32.gmra.mrb[0].mxu0 %v927
        %v1100 = vpop.f32.mrb[0].mxu0
        %v1101 = vadd.f32 %v817, %v1100
        %v1102 = vpop.f32.mrb[0].mxu0
        %1103 = vmatprep.mubr.f32.mxu0 0.0
        %1104 = vmatmul.mubr.f32.gmra.mrb[0].mxu0 %v930
        %v1105 = vpop.f32.mrb[0].mxu0
        %v1106 = vadd.f32 %v818, %v1105
        %v1107 = vpop.f32.mrb[0].mxu0
        %1108 = vmatprep.mubr.f32.mxu0 0.0
        %1109 = vmatmul.mubr.f32.gmra.mrb[0].mxu0 %v933
        %v1110 = vpop.f32.mrb[0].mxu0
        %v1111 = vadd.f32 %v819, %v1110
        %v1112 = vpop.f32.mrb[0].mxu0
        %1113 = vmatprep.mubr.f32.mxu0 0.0
        %1114 = vmatmul.mubr.f32.gmra.mrb[0].mxu0 %v936
        %v1115 = vpop.f32.mrb[0].mxu0
        %v1116 = vadd.f32 %v820, %v1115
        %v1117 = vpop.f32.mrb[0].mxu0
        %1118 = vmatprep.mubr.f32.mxu0 0.0
        %1119 = vmatmul.mubr.f32.gmra.mrb[0].mxu0 %v939
        %v1120 = vpop.f32.mrb[0].mxu0
        %v1121 = vadd.f32 %v821, %v1120
        %v1122 = vpop.f32.mrb[0].mxu0
        %1123 = vmatprep.mubr.f32.mxu0 0.0
        %1124 = vmatmul.mubr.f32.gmra.mrb[0].mxu0 %v942
        %v1125 = vpop.f32.mrb[0].mxu0
        %v1126 = vadd.f32 %v822, %v1125
        %v1127 = vpop.f32.mrb[0].mxu0
        %1128 = vmatprep.mubr.f32.mxu0 0.0
        %1129 = vmatmul.mubr.f32.gmra.mrb[0].mxu0 %v945
        %v1130 = vpop.f32.mrb[0].mxu0
        %v1131 = vadd.f32 %v823, %v1130
        %v1132 = vpop.f32.mrb[0].mxu0
        %1133 = vmatprep.mubr.f32.mxu0 0.0
        %1134 = vmatmul.mubr.f32.gmra.mrb[0].mxu0 %v948
        %v1135 = vpop.f32.mrb[0].mxu0
        %v1136 = vadd.f32 %v824, %v1135
        %v1137 = vpop.f32.mrb[0].mxu0
        %1138 = vmatprep.mubr.f32.mxu0 0.0
        %1139 = vmatmul.mubr.f32.gmra.mrb[0].mxu0 %v951
        %v1140 = vpop.f32.mrb[0].mxu0
        %v1141 = vadd.f32 %v825, %v1140
        %v1142 = vpop.f32.mrb[0].mxu0
        %1143 = vmatprep.mubr.f32.mxu0 0.0
        %1144 = vmatmul.mubr.f32.gmra.mrb[0].mxu0 %v954
        %v1145 = vpop.f32.mrb[0].mxu0
        %v1146 = vadd.f32 %v826, %v1145
        %v1147 = vpop.f32.mrb[0].mxu0
        %1148 = vmatprep.mubr.f32.mxu0 0.0
        %1149 = vmatmul.mubr.f32.gmra.mrb[0].mxu0 %v957
        %v1150 = vpop.f32.mrb[0].mxu0
        %v1151 = vadd.f32 %v827, %v1150
        %v1152 = vpop.f32.mrb[0].mxu0
        %1153 = vmatprep.mubr.f32.mxu0 0.0
        %1154 = vmatmul.mubr.f32.gmra.mrb[0].mxu0 %v960
        %v1155 = vpop.f32.mrb[0].mxu0
        %v1156 = vadd.f32 %v828, %v1155
        %v1157 = vpop.f32.mrb[0].mxu0
        %1158 = vmatprep.mubr.f32.mxu0 0.0
        %1159 = vmatmul.mubr.f32.gmra.mrb[0].mxu0 %v963
        %v1160 = vpop.f32.mrb[0].mxu0
        %v1161 = vadd.f32 %v829, %v1160
        %v1162 = vpop.f32.mrb[0].mxu0
        %1163 = vmatprep.mubr.f32.mxu0 0.0
        %1164 = vmatmul.mubr.f32.gmra.mrb[0].mxu0 %v966
        %v1165 = vpop.f32.mrb[0].mxu0
        %v1166 = vadd.f32 %v830, %v1165
        %v1167 = vpop.f32.mrb[0].mxu0
        %1168 = vmatprep.mubr.f32.mxu0 0.0
        %1169 = vmatmul.mubr.f32.gmra.mrb[0].mxu0 %v969
        %v1170 = vpop.f32.mrb[0].mxu0
        %v1171 = vadd.f32 %v831, %v1170
        %v1172 = vpop.f32.mrb[0].mxu0
        %1173 = vmatprep.mubr.f32.mxu0 0.0
        %1174 = vmatmul.mubr.f32.gmra.mrb[0].mxu0 %v972
        %v1175 = vpop.f32.mrb[0].mxu0
        %v1176 = vadd.f32 %v832, %v1175
        %v1177 = vpop.f32.mrb[0].mxu0
        %1178 = vmatprep.mubr.f32.mxu0 0.0
        %1179 = vmatmul.mubr.f32.gmra.mrb[0].mxu0 %v975
        %v1180 = vpop.f32.mrb[0].mxu0
        %v1181 = vadd.f32 %v833, %v1180
        %v1182 = vpop.f32.mrb[0].mxu0
        %1183 = vmatprep.mubr.f32.mxu0 0.0
        %1184 = vmatmul.mubr.f32.gmra.mrb[0].mxu0 %v978
        %v1185 = vpop.f32.mrb[0].mxu0
        %v1186 = vadd.f32 %v834, %v1185
        %v1187 = vpop.f32.mrb[0].mxu0
        %1188 = vmatprep.mubr.f32.mxu0 0.0
        %1189 = vmatmul.mubr.f32.gmra.mrb[0].mxu0 %v981
        %v1190 = vpop.f32.mrb[0].mxu0
        %v1191 = vadd.f32 %v835, %v1190
        %v1192 = vpop.f32.mrb[0].mxu0
        %1193 = vmatprep.mubr.f32.mxu0 0.0
        %1194 = vmatmul.mubr.f32.gmra.mrb[0].mxu0 %v984
        %v1195 = vpop.f32.mrb[0].mxu0
        %v1196 = vadd.f32 %v836, %v1195
        %v1197 = vpop.f32.mrb[0].mxu0
        %1198 = vmatprep.mubr.f32.mxu0 0.0
        %1199 = vmatmul.mubr.f32.gmra.mrb[0].mxu0 %v987
        %v1200 = vpop.f32.mrb[0].mxu0
        %v1201 = vadd.f32 %v837, %v1200
        %v1202 = vpop.f32.mrb[0].mxu0
        %1203 = vmatprep.mubr.f32.mxu0 0.0
        %1204 = vmatmul.mubr.f32.gmra.mrb[0].mxu0 %v990
        %v1205 = vpop.f32.mrb[0].mxu0
        %v1206 = vadd.f32 %v838, %v1205
        %v1207 = vpop.f32.mrb[0].mxu0
        %1208 = vmatprep.mubr.f32.mxu0 0.0
        %1209 = vmatmul.mubr.f32.gmra.mrb[0].mxu0 %v993
        %v1210 = vpop.f32.mrb[0].mxu0
        %v1211 = vadd.f32 %v839, %v1210
        %v1212 = vpop.f32.mrb[0].mxu0
        %1213 = vmatprep.mubr.f32.mxu0 0.0
        %1214 = vmatmul.mubr.f32.gmra.mrb[0].mxu0 %v996
        %v1215 = vpop.f32.mrb[0].mxu0
        %v1216 = vadd.f32 %v840, %v1215
        %v1217 = vpop.f32.mrb[0].mxu0
        %1218 = vmatprep.mubr.f32.mxu0 0.0
        %1219 = vmatmul.mubr.f32.gmra.mrb[0].mxu0 %v999
        %v1220 = vpop.f32.mrb[0].mxu0
        %v1221 = vadd.f32 %v841, %v1220
        %v1222 = vpop.f32.mrb[0].mxu0
        %1223 = vmatprep.mubr.f32.mxu0 0.0
        %1224 = vmatmul.mubr.f32.gmra.mrb[0].mxu0 %v1002
        %v1225 = vpop.f32.mrb[0].mxu0
        %v1226 = vadd.f32 %v842, %v1225
        %v1227 = vpop.f32.mrb[0].mxu0
        %1228 = vdwg.mxu0
        %v1229 = vmax.f32 %v1071, %v1091
        %v1230 = vmax.f32 %v1076, %v1096
        %v1231 = vmax.f32 %v1081, %v1101
        %v1232 = vmax.f32 %v1086, %v1106
        %v1233 = vmax.f32 %v1229, %v1111
        %v1234 = vmax.f32 %v1230, %v1116
        %v1235 = vmax.f32 %v1231, %v1121
        %v1236 = vmax.f32 %v1232, %v1126
        %v1237 = vmax.f32 %v1233, %v1131
        %v1238 = vmax.f32 %v1234, %v1136
        %v1239 = vmax.f32 %v1235, %v1141
        %v1240 = vmax.f32 %v1236, %v1146
        %v1241 = vmax.f32 %v1237, %v1151
        %v1242 = vmax.f32 %v1238, %v1156
        %v1243 = vmax.f32 %v1239, %v1161
        %v1244 = vmax.f32 %v1240, %v1166
        %v1245 = vmax.f32 %v1241, %v1171
        %v1246 = vmax.f32 %v1242, %v1176
        %v1247 = vmax.f32 %v1243, %v1181
        %v1248 = vmax.f32 %v1244, %v1186
        %v1249 = vmax.f32 %v1245, %v1191
        %v1250 = vmax.f32 %v1246, %v1196
        %v1251 = vmax.f32 %v1247, %v1201
        %v1252 = vmax.f32 %v1248, %v1206
        %v1253 = vmax.f32 %v1249, %v1211
        %v1254 = vmax.f32 %v1250, %v1216
        %v1255 = vmax.f32 %v1251, %v1221
        %v1256 = vmax.f32 %v1252, %v1226
        %v1257 = vmax.f32 %v1253, %v1254
        %v1258 = vmax.f32 %v1255, %v1256
        %v1259 = vmax.f32 %v1257, %v1258
        %v1260 = vrot.slane %v1259, 4
        %v1261 = vmax.f32 %v1259, %v1260
        %v1262 = vrot.slane %v1261, 2
        %v1263 = vmax.f32 %v1261, %v1262
        %v1264 = vrot.slane %v1263, 1
        %v1265 = vmax.f32 %v1263, %v1264
        %v1266 = vsub.f32 %v1071, %v1265
        %v1267 = vsub.f32 %v1076, %v1265
        %v1268 = vsub.f32 %v1081, %v1265
        %v1269 = vsub.f32 %v1086, %v1265
        %v1270 = vsub.f32 %v1091, %v1265
        %v1271 = vsub.f32 %v1096, %v1265
        %v1272 = vsub.f32 %v1101, %v1265
        %v1273 = vsub.f32 %v1106, %v1265
        %v1274 = vsub.f32 %v1111, %v1265
        %v1275 = vsub.f32 %v1116, %v1265
        %v1276 = vsub.f32 %v1121, %v1265
        %v1277 = vsub.f32 %v1126, %v1265
        %v1278 = vsub.f32 %v1131, %v1265
        %v1279 = vsub.f32 %v1136, %v1265
        %v1280 = vsub.f32 %v1141, %v1265
        %v1281 = vsub.f32 %v1146, %v1265
        %v1282 = vsub.f32 %v1151, %v1265
        %v1283 = vsub.f32 %v1156, %v1265
        %v1284 = vsub.f32 %v1161, %v1265
        %v1285 = vsub.f32 %v1166, %v1265
        %v1286 = vsub.f32 %v1171, %v1265
        %v1287 = vsub.f32 %v1176, %v1265
        %v1288 = vsub.f32 %v1181, %v1265
        %v1289 = vsub.f32 %v1186, %v1265
        %v1290 = vsub.f32 %v1191, %v1265
        %v1291 = vsub.f32 %v1196, %v1265
        %v1292 = vsub.f32 %v1201, %v1265
        %v1293 = vsub.f32 %v1206, %v1265
        %v1294 = vsub.f32 %v1211, %v1265
        %v1295 = vsub.f32 %v1216, %v1265
        %v1296 = vsub.f32 %v1221, %v1265
        %v1297 = vsub.f32 %v1226, %v1265
        %v1298 = vmul.f32 %v1266, 1.442695
        %v1299 = vpow.pop %v1298
        %v1300 = vmul.f32 %v1267, 1.442695
        %v1301 = vpow.pop %v1300
        %v1302 = vmul.f32 %v1268, 1.442695
        %v1303 = vpow.pop %v1302
        %v1304 = vmul.f32 %v1269, 1.442695
        %v1305 = vpow.pop %v1304
        %v1306 = vmul.f32 %v1270, 1.442695
        %v1307 = vpow.pop %v1306
        %v1308 = vmul.f32 %v1271, 1.442695
        %v1309 = vpow.pop %v1308
        %v1310 = vmul.f32 %v1272, 1.442695
        %v1311 = vpow.pop %v1310
        %v1312 = vmul.f32 %v1273, 1.442695
        %v1313 = vpow.pop %v1312
        %v1314 = vmul.f32 %v1274, 1.442695
        %v1315 = vpow.pop %v1314
        %v1316 = vmul.f32 %v1275, 1.442695
        %v1317 = vpow.pop %v1316
        %v1318 = vmul.f32 %v1276, 1.442695
        %v1319 = vpow.pop %v1318
        %v1320 = vmul.f32 %v1277, 1.442695
        %v1321 = vpow.pop %v1320
        %v1322 = vmul.f32 %v1278, 1.442695
        %v1323 = vpow.pop %v1322
        %v1324 = vmul.f32 %v1279, 1.442695
        %v1325 = vpow.pop %v1324
        %v1326 = vmul.f32 %v1280, 1.442695
        %v1327 = vpow.pop %v1326
        %v1328 = vmul.f32 %v1281, 1.442695
        %v1329 = vpow.pop %v1328
        %v1330 = vmul.f32 %v1282, 1.442695
        %v1331 = vpow.pop %v1330
        %v1332 = vmul.f32 %v1283, 1.442695
        %v1333 = vpow.pop %v1332
        %v1334 = vmul.f32 %v1284, 1.442695
        %v1335 = vpow.pop %v1334
        %v1336 = vmul.f32 %v1285, 1.442695
        %v1337 = vpow.pop %v1336
        %v1338 = vmul.f32 %v1286, 1.442695
        %v1339 = vpow.pop %v1338
        %v1340 = vmul.f32 %v1287, 1.442695
        %v1341 = vpow.pop %v1340
        %v1342 = vmul.f32 %v1288, 1.442695
        %v1343 = vpow.pop %v1342
        %v1344 = vmul.f32 %v1289, 1.442695
        %v1345 = vpow.pop %v1344
        %v1346 = vmul.f32 %v1290, 1.442695
        %v1347 = vpow.pop %v1346
        %v1348 = vmul.f32 %v1291, 1.442695
        %v1349 = vpow.pop %v1348
        %v1350 = vmul.f32 %v1292, 1.442695
        %v1351 = vpow.pop %v1350
        %v1352 = vmul.f32 %v1293, 1.442695
        %v1353 = vpow.pop %v1352
        %v1354 = vmul.f32 %v1294, 1.442695
        %v1355 = vpow.pop %v1354
        %v1356 = vmul.f32 %v1295, 1.442695
        %v1357 = vpow.pop %v1356
        %v1358 = vmul.f32 %v1296, 1.442695
        %v1359 = vpow.pop %v1358
        %v1360 = vmul.f32 %v1297, 1.442695
        %v1361 = vpow.pop %v1360
        %v1362 = vadd.f32 %v1299, %v1301
        %v1363 = vadd.f32 %v1362, %v1303
        %v1364 = vadd.f32 %v1363, %v1305
        %v1365 = vadd.f32 %v1364, %v1307
        %v1366 = vadd.f32 %v1365, %v1309
        %v1367 = vadd.f32 %v1366, %v1311
        %v1368 = vadd.f32 %v1367, %v1313
        %v1369 = vadd.f32 %v1368, %v1315
        %v1370 = vadd.f32 %v1369, %v1317
        %v1371 = vadd.f32 %v1370, %v1319
        %v1372 = vadd.f32 %v1371, %v1321
        %v1373 = vadd.f32 %v1372, %v1323
        %v1374 = vadd.f32 %v1373, %v1325
        %v1375 = vadd.f32 %v1374, %v1327
        %v1376 = vadd.f32 %v1375, %v1329
        %v1377 = vadd.f32 %v1376, %v1331
        %v1378 = vadd.f32 %v1377, %v1333
        %v1379 = vadd.f32 %v1378, %v1335
        %v1380 = vadd.f32 %v1379, %v1337
        %v1381 = vadd.f32 %v1380, %v1339
        %v1382 = vadd.f32 %v1381, %v1341
        %v1383 = vadd.f32 %v1382, %v1343
        %v1384 = vadd.f32 %v1383, %v1345
        %v1385 = vadd.f32 %v1384, %v1347
        %v1386 = vadd.f32 %v1385, %v1349
        %v1387 = vadd.f32 %v1386, %v1351
        %v1388 = vadd.f32 %v1387, %v1353
        %v1389 = vadd.f32 %v1388, %v1355
        %v1390 = vadd.f32 %v1389, %v1357
        %v1391 = vadd.f32 %v1390, %v1359
        %v1392 = vadd.f32 %v1391, %v1361
        %v1393 = vrot.slane %v1392, 4
        %v1394 = vadd.f32 %v1392, %v1393
        %v1395 = vrot.slane %v1394, 2
        %v1396 = vadd.f32 %v1394, %v1395
        %v1397 = vrot.slane %v1396, 1
        %v1398 = vadd.f32 %v1396, %v1397
        %v1399 = vrcp.pop %v1398
        %v1400 = vmul.f32 %v1299, %v1399
        %v1401 = vmul.f32 %v1301, %v1399
        %v1402 = vmul.f32 %v1303, %v1399
        %v1403 = vmul.f32 %v1305, %v1399
        %v1404 = vmul.f32 %v1307, %v1399
        %v1405 = vmul.f32 %v1309, %v1399
        %v1406 = vmul.f32 %v1311, %v1399
        %v1407 = vmul.f32 %v1313, %v1399
        %v1408 = vmul.f32 %v1315, %v1399
        %v1409 = vmul.f32 %v1317, %v1399
        %v1410 = vmul.f32 %v1319, %v1399
        %v1411 = vmul.f32 %v1321, %v1399
        %v1412 = vmul.f32 %v1323, %v1399
        %v1413 = vmul.f32 %v1325, %v1399
        %v1414 = vmul.f32 %v1327, %v1399
        %v1415 = vmul.f32 %v1329, %v1399
        %v1416 = vmul.f32 %v1331, %v1399
        %v1417 = vmul.f32 %v1333, %v1399
        %v1418 = vmul.f32 %v1335, %v1399
        %v1419 = vmul.f32 %v1337, %v1399
        %v1420 = vmul.f32 %v1339, %v1399
        %v1421 = vmul.f32 %v1341, %v1399
        %v1422 = vmul.f32 %v1343, %v1399
        %v1423 = vmul.f32 %v1345, %v1399
        %v1424 = vmul.f32 %v1347, %v1399
        %v1425 = vmul.f32 %v1349, %v1399
        %v1426 = vmul.f32 %v1351, %v1399
        %v1427 = vmul.f32 %v1353, %v1399
        %v1428 = vmul.f32 %v1355, %v1399
        %v1429 = vmul.f32 %v1357, %v1399
        %v1430 = vmul.f32 %v1359, %v1399
        %v1431 = vmul.f32 %v1361, %v1399
        %1432 = vst [vmem:[%s382] sm:$0xff] %v1400
        %1433 = vst [vmem:[%s382 + $0x8] sm:$0xff] %v1401
        %1434 = vst [vmem:[%s382 + $0x10] sm:$0xff] %v1402
        %1435 = vst [vmem:[%s382 + $0x18] sm:$0xff] %v1403
        %1436 = vst [vmem:[%s382 + $0x20] sm:$0xff] %v1404
        %1437 = vst [vmem:[%s382 + $0x28] sm:$0xff] %v1405
        %1438 = vst [vmem:[%s382 + $0x30] sm:$0xff] %v1406
        %1439 = vst [vmem:[%s382 + $0x38] sm:$0xff] %v1407
        %1440 = vst [vmem:[%s382 + $0x40] sm:$0xff] %v1408
        %1441 = vst [vmem:[%s382 + $0x48] sm:$0xff] %v1409
        %1442 = vst [vmem:[%s382 + $0x50] sm:$0xff] %v1410
        %1443 = vst [vmem:[%s382 + $0x58] sm:$0xff] %v1411
        %1444 = vst [vmem:[%s382 + $0x60] sm:$0xff] %v1412
        %1445 = vst [vmem:[%s382 + $0x68] sm:$0xff] %v1413
        %1446 = vst [vmem:[%s382 + $0x70] sm:$0xff] %v1414
        %1447 = vst [vmem:[%s382 + $0x78] sm:$0xff] %v1415
        %1448 = vst [vmem:[%s382 + $0x80] sm:$0xff] %v1416
        %1449 = vst [vmem:[%s382 + $0x88] sm:$0xff] %v1417
        %1450 = vst [vmem:[%s382 + $0x90] sm:$0xff] %v1418
        %1451 = vst [vmem:[%s382 + $0x98] sm:$0xff] %v1419
        %1452 = vst [vmem:[%s382 + $0xa0] sm:$0xff] %v1420
        %1453 = vst [vmem:[%s382 + $0xa8] sm:$0xff] %v1421
        %1454 = vst [vmem:[%s382 + $0xb0] sm:$0xff] %v1422
        %1455 = vst [vmem:[%s382 + $0xb8] sm:$0xff] %v1423
        %1456 = vst [vmem:[%s382 + $0xc0] sm:$0xff] %v1424
        %1457 = vst [vmem:[%s382 + $0xc8] sm:$0xff] %v1425
        %1458 = vst [vmem:[%s382 + $0xd0] sm:$0xff] %v1426
        %1459 = vst [vmem:[%s382 + $0xd8] sm:$0xff] %v1427
        %1460 = vst [vmem:[%s382 + $0xe0] sm:$0xff] %v1428
        %1461 = vst [vmem:[%s382 + $0xe8] sm:$0xff] %v1429
        %1462 = vst [vmem:[%s382 + $0xf0] sm:$0xff] %v1430
        %1463 = vst [vmem:[%s382 + $0xf8] sm:$0xff] %v1431
        %s1464 = sand.u32 %s196, 1
        %s1465 = scalar_lea.sflag [#allocation4], %s1464
        %s1466 = sand.u32 %s196, 1
        %s1467 = smul.addr %s1466, 256
        %s1468 = scalar_lea.vmem [#allocation11], %s1467
        // Predicated region
        $region69: #{tpu_custom_call.1} parent=47 // pred_check
          %p1469 = pneg %p206
        $region70: #{tpu_custom_call.1} parent=47 // pred_check_branch
          %1471 = sbr.rel (%p1469) target = $region72
        $region71: #{tpu_custom_call.1} parent=47 // pred_region
          %s1473 = ssub.s32 4096, 4096
          %1474 = vsyncadd %s1465, %s1473
          %s1475 = smul.addr %s26, 128
          %s1476 = scalar_lea.hbm %s7, %s1475
          %s1477 = sshll.u32 %s1468, 4
          %s1478 = int_to_ptr.vmem [resolvable:$true] %s1477
          %1483 = dma.vmem_to_hbm [thread:$0]  %s1478, 4096, %s1476, %s1465, 128, 256, 8
        $region72: #{tpu_custom_call.1} parent=47 // pred_fallthru
          _
      $region48: #{tpu_custom_call.1} parent=5 // pred_fallthru
        _
      %p1484 = scmp.le.s32.totalorder 2, %s21
      // Predicated region
      $region73: #{tpu_custom_call.1} parent=5 // pred_check
        %p1485 = pneg %p1484
      $region74: #{tpu_custom_call.1} parent=5 // pred_check_branch
        %1487 = sbr.rel (%p1485) target = $region76
      $region75: #{tpu_custom_call.1} parent=5 // pred_region
        %s1488 = ssub.s32 %s21, 2
        // Predicated region
        $region77: #{tpu_custom_call.1} parent=75 // pred_check
          %p1489 = pneg %p212
        $region78: #{tpu_custom_call.1} parent=75 // pred_check_branch
          %1491 = sbr.rel (%p1489) target = $region80
        $region79: #{tpu_custom_call.1} parent=75 // pred_region
          %s1492 = sand.u32 %s197, 1
          %s1493 = scalar_lea.sflag [#allocation4], %s1492
          %s1494 = sand.u32 %s197, 1
          %s1495 = smul.addr %s1494, 256
          %s1496 = scalar_lea.vmem [#allocation11], %s1495
          %1497 = dma.done %s1493, 4096
        $region80: #{tpu_custom_call.1} parent=75 // pred_fallthru
          _
      $region76: #{tpu_custom_call.1} parent=5 // pred_fallthru
        _
    $region6: #{tpu_custom_call.1} parent=1 // loop_footer
      %s25 = sadd.s32 1, %s21
    $region7: #{tpu_custom_call.1} parent=1 // loop_footer_branch
      %20 = sbr.rel target = $region3
    $region8: #{tpu_custom_call.1} parent=1 // loop_exit
      _
    %1498 = vsyncpa [#allocation3], 1
    %s1499 = scalar_lea.sflag [#allocation3], 1
    %1500 = vsyncpa %s1499, 1
    %1501 = vsyncpa [#allocation6], 1
    %1502 = vsyncpa [#allocation10], 1
    %s1503 = scalar_lea.sflag [#allocation10], 1
    %1504 = vsyncpa %s1503, 1
    %1505 = vsyncpa [#allocation4], 1
    %s1506 = scalar_lea.sflag [#allocation4], 1
    %1507 = vsyncpa %s1506, 1

</llo_original>
